<compile_context>
chip_gen: v5e
topology: v5e:2x2
jax: 0.10.0
libtpu: 0.0.40
codegen_flags: <defaults>
</compile_context>

<pallas_src>
import jax
import jax.numpy as jnp
import numpy as np
from jax.experimental import pallas as pl
from jax.experimental.pallas import tpu as pltpu

_VMEM_LIMIT = 48 * 1024 * 1024          # safe on v5e/v6e (128 MiB) and v7x (64 MiB)
_RESIDENT_BYTES = 8 * 1024 * 1024       # keep an operand VMEM-resident if <= 8 MiB


# ----------------------------------------------------------------------------
# helpers
# ----------------------------------------------------------------------------
def _round_up(x, m):
    return (x + m - 1) // m * m


def _pick_tile(n, preferred):
    """Largest power-of-two tile <= preferred that divides n (n % 128 == 0)."""
    t = preferred
    while n % t != 0:
        t //= 2
    return t


def _pad2(x, rows, cols):
    r, c = x.shape
    if r == rows and c == cols:
        return x
    return jnp.pad(x, ((0, rows - r), (0, cols - c)))


# ----------------------------------------------------------------------------
# Kernel 1: degree -> norm computation, A tiled on both axes.
#   grid = (col_tiles [parallel], row_tiles [arbitrary/reduction])
#   out-degree (column sums) reduces over the inner row axis into a resident
#   (1, tc) output block; in-degree row-sum partials are emitted per column
#   tile and summed by a trivial XLA op in the wrapper (megacore-safe).
# ----------------------------------------------------------------------------
def _degree_norm_kernel(a_ref, nout_ref, rowsum_ref, colacc):
    i = pl.program_id(1)                                  # row-tile (reduction)

    @pl.when(i == 0)
    def _():
        colacc[...] = jnp.zeros_like(colacc)

    nz = (a_ref[...] != 0).astype(jnp.float32)            # (tm, tc)

    # column-sum partial (reduced across row tiles in scratch)
    colacc[...] += jnp.sum(nz, axis=0, keepdims=True)     # (1, tc)

    # row-sum partial for this (row tile, col tile) -> side output
    rowsum_ref[...] = jnp.sum(nz, axis=1, keepdims=True)[None]   # (1, tm, 1)

    @pl.when(i == pl.num_programs(1) - 1)
    def _():
        nout_ref[...] = jax.lax.rsqrt(jnp.maximum(colacc[...], 1.0))


def degree_norms(a, *, tm=512, tc=1024):
    n = a.shape[0]
    tm = _pick_tile(n, tm)
    tc = _pick_tile(n, tc)
    ni = n // tm
    nj = n // tc

    nout_row, rowsums = pl.pallas_call(
        _degree_norm_kernel,
        out_shape=(jax.ShapeDtypeStruct((1, n), jnp.float32),
                   jax.ShapeDtypeStruct((nj, n, 1), jnp.float32)),
        grid_spec=pltpu.PrefetchScalarGridSpec(
            num_scalar_prefetch=0,
            grid=(nj, ni),                                   # (col tiles, row tiles)
            in_specs=[pl.BlockSpec((tm, tc), lambda j, i: (i, j))],
            out_specs=[pl.BlockSpec((1, tc), lambda j, i: (0, j)),
                       pl.BlockSpec((1, tm, 1), lambda j, i: (j, i, 0))],
            scratch_shapes=[pltpu.VMEM((1, tc), jnp.float32)]),
        compiler_params=pltpu.CompilerParams(
            dimension_semantics=("parallel", "arbitrary"),
            vmem_limit_bytes=_VMEM_LIMIT),
    )(a)

    # tiny (n x nj) reduction in XLA finishes the in-degree
    in_deg = jnp.sum(rowsums, axis=0)                        # (n, 1)
    norm_in = jax.lax.rsqrt(jnp.maximum(in_deg, 1.0))        # (n, 1) dst scale
    norm_out = jnp.reshape(nout_row, (n, 1))                 # (n, 1) src scale
    return norm_in, norm_out


# ----------------------------------------------------------------------------
# Kernel 2: feature transform  H = (X * norm_out) @ W   (row-tiled, W resident)
# ----------------------------------------------------------------------------
def _transform_kernel(x_ref, nout_ref, w_ref, o_ref):
    xs = x_ref[...] * nout_ref[...]                          # (tm, Fin)
    o_ref[...] = jnp.dot(xs, w_ref[...],
                         preferred_element_type=jnp.float32)  # (tm, Fout)


def transform(x, norm_out, w, *, tm=512):
    n, f_in = x.shape
    f_out = w.shape[1]
    tm = _pick_tile(n, tm)
    return pl.pallas_call(
        _transform_kernel,
        out_shape=jax.ShapeDtypeStruct((n, f_out), jnp.float32),
        grid_spec=pltpu.PrefetchScalarGridSpec(
            num_scalar_prefetch=0,
            grid=(n // tm,),
            in_specs=[pl.BlockSpec((tm, f_in), lambda i: (i, 0)),
                      pl.BlockSpec((tm, 1), lambda i: (i, 0)),
                      pl.BlockSpec((f_in, f_out), lambda i: (0, 0))],
            out_specs=pl.BlockSpec((tm, f_out), lambda i: (i, 0))),
        compiler_params=pltpu.CompilerParams(
            dimension_semantics=("parallel",),
            vmem_limit_bytes=_VMEM_LIMIT),
    )(x, norm_out, w)


# ----------------------------------------------------------------------------
# Kernel 3: weighted-sum aggregation   Y = (A @ H) * norm_in + b
#   grid = (dst-row tiles [parallel], src-reduction tiles [arbitrary])
#   H is VMEM-resident when it fits (sliced in-kernel), otherwise streamed.
#   Optional fused epilogue (layer 1): output = ((Y) * norm_out) @ W2,
#   removing the HBM round trip of the inter-layer activation.
# ----------------------------------------------------------------------------
def _make_aggregate_kernel(resident_h, fused):
    def kernel(a_ref, h_ref, nin_ref, b_ref, *rest):
        if fused:
            nout_ref, w2_ref, o_ref, acc_ref = rest
        else:
            o_ref, acc_ref = rest

        k = pl.program_id(1)

        @pl.when(k == 0)
        def _():
            acc_ref[...] = jnp.zeros_like(acc_ref)

        if resident_h:
            tk = a_ref.shape[1]
            start = pl.multiple_of(k * tk, 128)
            h_blk = h_ref[pl.ds(start, tk), :]
        else:
            h_blk = h_ref[...]

        acc_ref[...] += jnp.dot(a_ref[...], h_blk,
                                preferred_element_type=jnp.float32)

        @pl.when(k == pl.num_programs(1) - 1)
        def _():
            y = acc_ref[...] * nin_ref[...] + b_ref[...]
            if fused:
                o_ref[...] = jnp.dot(y * nout_ref[...], w2_ref[...],
                                     preferred_element_type=jnp.float32)
            else:
                o_ref[...] = y

    return kernel


def aggregate(a, h, norm_in, b, norm_out=None, w2=None, *, tm=512, tk=1024):
    n = a.shape[0]
    f_out = h.shape[1]
    fused = w2 is not None
    f_final = w2.shape[1] if fused else f_out
    tm = _pick_tile(n, tm)
    tk = _pick_tile(n, tk)

    resident_h = (h.size * 4) <= _RESIDENT_BYTES
    if resident_h:
        h_spec = pl.BlockSpec((n, f_out), lambda i, k: (0, 0))   # DMA'd once
    else:
        h_spec = pl.BlockSpec((tk, f_out), lambda i, k: (k, 0))  # streamed

    in_specs = [pl.BlockSpec((tm, tk), lambda i, k: (i, k)),      # A
                h_spec,                                           # H
                pl.BlockSpec((tm, 1), lambda i, k: (i, 0)),       # norm_in
                pl.BlockSpec((1, f_out), lambda i, k: (0, 0))]    # bias
    inputs = [a, h, norm_in, b]
    if fused:
        in_specs += [pl.BlockSpec((tm, 1), lambda i, k: (i, 0)),          # norm_out
                     pl.BlockSpec((f_out, f_final), lambda i, k: (0, 0))]  # W2 resident
        inputs += [norm_out, w2]

    return pl.pallas_call(
        _make_aggregate_kernel(resident_h, fused),
        out_shape=jax.ShapeDtypeStruct((n, f_final), jnp.float32),
        grid_spec=pltpu.PrefetchScalarGridSpec(
            num_scalar_prefetch=0,
            grid=(n // tm, n // tk),
            in_specs=in_specs,
            out_specs=pl.BlockSpec((tm, f_final), lambda i, k: (i, 0)),
            scratch_shapes=[pltpu.VMEM((tm, f_out), jnp.float32)]),
        compiler_params=pltpu.CompilerParams(
            dimension_semantics=("parallel", "arbitrary"),
            vmem_limit_bytes=_VMEM_LIMIT),
    )(*inputs)


# ----------------------------------------------------------------------------
# Kernel 4: InnerProductDecoder  adj = Z @ Z.T  (activation = identity)
#   tiled (tm, tn) output; Z kept VMEM-resident for the column operand when it
#   fits; contraction expressed without an explicit transpose.
# ----------------------------------------------------------------------------
def _make_decoder_kernel(resident_z):
    def kernel(zr_ref, zc_ref, o_ref):
        if resident_z:
            tn = o_ref.shape[1]
            j = pl.program_id(1)
            start = pl.multiple_of(j * tn, 128)
            zc = zc_ref[pl.ds(start, tn), :]
        else:
            zc = zc_ref[...]
        o_ref[...] = jax.lax.dot_general(
            zr_ref[...], zc,
            dimension_numbers=(((1,), (1,)), ((), ())),
            preferred_element_type=jnp.float32)
    return kernel


def inner_product_decoder(z, *, tm=512, tn=512):
    n, d = z.shape
    tm = _pick_tile(n, tm)
    tn = _pick_tile(n, tn)
    resident_z = (z.size * 4) <= _RESIDENT_BYTES
    if resident_z:
        zc_spec = pl.BlockSpec((n, d), lambda i, j: (0, 0))       # DMA'd once
    else:
        zc_spec = pl.BlockSpec((tn, d), lambda i, j: (j, 0))
    return pl.pallas_call(
        _make_decoder_kernel(resident_z),
        out_shape=jax.ShapeDtypeStruct((n, n), jnp.float32),
        grid_spec=pltpu.PrefetchScalarGridSpec(
            num_scalar_prefetch=0,
            grid=(n // tm, n // tn),
            in_specs=[pl.BlockSpec((tm, d), lambda i, j: (i, 0)), zc_spec],
            out_specs=pl.BlockSpec((tm, tn), lambda i, j: (i, j))),
        compiler_params=pltpu.CompilerParams(
            dimension_semantics=("parallel", "parallel"),
            vmem_limit_bytes=_VMEM_LIMIT),
    )(z, z)


# ----------------------------------------------------------------------------
# GCNAE forward (n_layers=2, hidden=None, activation=None, agg='sum', eval mode)
# ----------------------------------------------------------------------------
@jax.jit
def gcnae_forward(features, adj, w1, b1, w2, b2):
    n, f_in = features.shape
    f_hid = w1.shape[1]

    # zero-pad everything to lane-dense (multiple-of-128) shapes; padded nodes
    # have zero edges (degree clamped to 1) and padded feature columns are
    # zero, so the sliced-back results are exact.
    n_pad = _round_up(n, 128)
    f_in_pad = _round_up(f_in, 128)
    f_hid_pad = _round_up(f_hid, 128)

    x = _pad2(features, n_pad, f_in_pad)
    a = _pad2(adj, n_pad, n_pad)
    w1p = _pad2(w1, f_in_pad, f_hid_pad)
    w2p = _pad2(w2, f_hid_pad, f_hid_pad)
    b1p = _pad2(b1, 1, f_hid_pad)
    b2p = _pad2(b2, 1, f_hid_pad)

    # degree-based norms (single column+row tiled Pallas pass over A)
    norm_in, norm_out = degree_norms(a)                  # (N,1), (N,1)

    # layer 1 transform:  h1 = (X * norm_out) @ W1
    h1 = transform(x, norm_out, w1p)
    # layer-1 aggregate fused with layer-2 transform:
    #   h2 = (((A @ h1) * norm_in + b1) * norm_out) @ W2
    h2 = aggregate(a, h1, norm_in, b1p, norm_out=norm_out, w2=w2p)
    # layer 2 aggregate:  z = (A @ h2) * norm_in + b2
    z = aggregate(a, h2, norm_in, b2p)

    adj_rec = inner_product_decoder(z)
    return adj_rec[:n, :n], z[:n, :f_hid]


# ----------------------------------------------------------------------------
# pure-JAX reference (unpadded)
# ----------------------------------------------------------------------------
def _reference_forward(features, adj, w1, b1, w2, b2):
    mask = (adj != 0).astype(jnp.float32)
    in_deg = jnp.clip(jnp.sum(mask, axis=1, keepdims=True), 1.0, None)
    out_deg = jnp.clip(jnp.sum(mask, axis=0)[:, None], 1.0, None)
    norm_in = 1.0 / jnp.sqrt(in_deg)
    norm_out = 1.0 / jnp.sqrt(out_deg)

    def layer(x, w, b):
        h = (x * norm_out) @ w
        return (adj @ h) * norm_in + b

    x = layer(features, w1, b1)
    x = layer(x, w2, b2)
    return x @ x.T, x


if __name__ == "__main__":
    N = 64            # number of nodes
    IN_FEATS = 16     # in_features
    N_HIDDEN = 32     # n_hidden

    key = jax.random.PRNGKey(0)
    k_feat, k_adj, k_ew, k_w1, k_w2 = jax.random.split(key, 5)

    features = jax.random.normal(k_feat, (N, IN_FEATS), dtype=jnp.float32)

    # sparse-ish weighted adjacency (dense storage), A[dst, src] = edge weight
    edge_mask = (jax.random.uniform(k_adj, (N, N)) < 0.2).astype(jnp.float32)
    edge_w = jax.random.uniform(k_ew, (N, N), minval=0.1, maxval=1.0)
    adj = edge_mask * edge_w

    # deterministic parameter init (xavier-uniform-ish), biases zero
    def xavier(k, shape):
        bound = float(np.sqrt(6.0 / (shape[0] + shape[1])))
        return jax.random.uniform(k, shape, minval=-bound, maxval=bound,
                                  dtype=jnp.float32)

    w1 = xavier(k_w1, (IN_FEATS, N_HIDDEN))
    b1 = jnp.zeros((1, N_HIDDEN), dtype=jnp.float32)
    w2 = xavier(k_w2, (N_HIDDEN, N_HIDDEN))
    b2 = jnp.zeros((1, N_HIDDEN), dtype=jnp.float32)

    adj_rec, z = gcnae_forward(features, adj, w1, b1, w2, b2)
    jax.block_until_ready((adj_rec, z))

    adj_ref, z_ref = _reference_forward(features, adj, w1, b1, w2, b2)
    np.testing.assert_allclose(np.asarray(z), np.asarray(z_ref),
                               rtol=1e-4, atol=1e-4)
    np.testing.assert_allclose(np.asarray(adj_rec), np.asarray(adj_ref),
                               rtol=1e-4, atol=1e-4)

    print("KERNEL_OK")
</pallas_src>

<mosaic_0001>
module attributes {stable_mosaic.version = 11 : i64} {
  func.func @_degree_norm_kernel(%arg0: i32, %arg1: i32, %arg2: memref<128x128xf32, #tpu.memory_space<vmem>>, %arg3: memref<1x128xf32, #tpu.memory_space<vmem>>, %arg4: memref<1x128x1xf32, #tpu.memory_space<vmem>>, %arg5: memref<1x128xf32, #tpu.memory_space<vmem>>) attributes {dimension_semantics = [#tpu.dimension_semantics<parallel>, #tpu.dimension_semantics<arbitrary>], iteration_bounds = array<i64: 1, 1>, scalar_prefetch = 0 : i64, scratch_operands = 1 : i64, tpu.core_type = #tpu.core_type<tc>, window_params = [{transform_indices = @transform_0, window_bounds = array<i64: 128, 128>}, {transform_indices = @transform_1, window_bounds = array<i64: 1, 128>}, {transform_indices = @transform_2, window_bounds = array<i64: 1, 128, 1>}]} {
    %c0_i32 = arith.constant 0 : i32
    %0 = arith.cmpi eq, %arg1, %c0_i32 : i32
    %1 = arith.extui %0 : i1 to i32
    %c0_i32_0 = arith.constant 0 : i32
    %2 = arith.cmpi ne, %1, %c0_i32_0 : i32
    scf.if %2 {
      %cst_13 = arith.constant 0.000000e+00 : f32
      %20 = vector.broadcast %cst_13 : f32 to vector<1x128xf32>
      %c0_14 = arith.constant 0 : index
      %c0_15 = arith.constant 0 : index
      %21 = vector.load %arg5[%c0_14, %c0_15] : memref<1x128xf32, #tpu.memory_space<vmem>>, vector<1x128xf32>
      tpu.vector_store %arg5[%c0_14, %c0_15], %20 {strides = array<i32>} : memref<1x128xf32, #tpu.memory_space<vmem>>, vector<1x128xf32>,
    } else {
    }
    %c0 = arith.constant 0 : index
    %c0_1 = arith.constant 0 : index
    %3 = vector.load %arg2[%c0, %c0_1] : memref<128x128xf32, #tpu.memory_space<vmem>>, vector<128x128xf32>
    %cst = arith.constant 0.000000e+00 : f32
    %4 = vector.broadcast %cst : f32 to vector<128x128xf32>
    %5 = arith.cmpf one, %3, %4 : vector<128x128xf32>
    %6 = arith.extui %5 : vector<128x128xi1> to vector<128x128xi32>
    %7 = arith.sitofp %6 : vector<128x128xi32> to vector<128x128xf32>
    %c0_2 = arith.constant 0 : index
    %c0_3 = arith.constant 0 : index
    %8 = vector.load %arg5[%c0_2, %c0_3] : memref<1x128xf32, #tpu.memory_space<vmem>>, vector<1x128xf32>
    %cst_4 = arith.constant dense<0.000000e+00> : vector<128xf32>
    %9 = vector.multi_reduction <add>, %7, %cst_4 [0] : vector<128x128xf32> to vector<128xf32>
    %10 = vector.shape_cast %9 : vector<128xf32> to vector<1x128xf32>
    %11 = arith.addf %8, %10 : vector<1x128xf32>
    %c0_5 = arith.constant 0 : index
    %c0_6 = arith.constant 0 : index
    %12 = vector.load %arg5[%c0_5, %c0_6] : memref<1x128xf32, #tpu.memory_space<vmem>>, vector<1x128xf32>
    tpu.vector_store %arg5[%c0_5, %c0_6], %11 {strides = array<i32>} : memref<1x128xf32, #tpu.memory_space<vmem>>, vector<1x128xf32>,
    %cst_7 = arith.constant dense<0.000000e+00> : vector<128xf32>
    %13 = vector.multi_reduction <add>, %7, %cst_7 [1] : vector<128x128xf32> to vector<128xf32>
    %14 = vector.shape_cast %13 : vector<128xf32> to vector<128x1xf32>
    %15 = vector.shape_cast %14 : vector<128x1xf32> to vector<1x128x1xf32>
    %c0_8 = arith.constant 0 : index
    %c0_9 = arith.constant 0 : index
    %c0_10 = arith.constant 0 : index
    %16 = vector.load %arg4[%c0_8, %c0_9, %c0_10] : memref<1x128x1xf32, #tpu.memory_space<vmem>>, vector<1x128x1xf32>
    tpu.vector_store %arg4[%c0_8, %c0_9, %c0_10], %15 {strides = array<i32>} : memref<1x128x1xf32, #tpu.memory_space<vmem>>, vector<1x128x1xf32>,
    %c0_i32_11 = arith.constant 0 : i32
    %17 = arith.cmpi eq, %arg1, %c0_i32_11 : i32
    %18 = arith.extui %17 : i1 to i32
    %c0_i32_12 = arith.constant 0 : i32
    %19 = arith.cmpi ne, %18, %c0_i32_12 : i32
    scf.if %19 {
      %c0_13 = arith.constant 0 : index
      %c0_14 = arith.constant 0 : index
      %20 = vector.load %arg5[%c0_13, %c0_14] : memref<1x128xf32, #tpu.memory_space<vmem>>, vector<1x128xf32>
      %cst_15 = arith.constant 1.000000e+00 : f32
      %21 = vector.broadcast %cst_15 : f32 to vector<1x128xf32>
      %22 = arith.maximumf %20, %21 : vector<1x128xf32>
      %23 = math.rsqrt %22 : vector<1x128xf32>
      %c0_16 = arith.constant 0 : index
      %c0_17 = arith.constant 0 : index
      %24 = vector.load %arg3[%c0_16, %c0_17] : memref<1x128xf32, #tpu.memory_space<vmem>>, vector<1x128xf32>
      tpu.vector_store %arg3[%c0_16, %c0_17], %23 {strides = array<i32>} : memref<1x128xf32, #tpu.memory_space<vmem>>, vector<1x128xf32>,
    } else {
    }
    return
  }
  func.func @transform_0(%arg0: i32, %arg1: i32) -> (i32, i32) {
    %c0_i32 = arith.constant 0 : i32
    return %arg1, %arg0 : i32, i32
  }
  func.func @transform_1(%arg0: i32, %arg1: i32) -> (i32, i32) {
    %c0_i32 = arith.constant 0 : i32
    %c0_i32_0 = arith.constant 0 : i32
    return %c0_i32, %arg0 : i32, i32
  }
  func.func @transform_2(%arg0: i32, %arg1: i32) -> (i32, i32, i32) {
    %c0_i32 = arith.constant 0 : i32
    %c0_i32_0 = arith.constant 0 : i32
    return %arg0, %arg1, %c0_i32 : i32, i32, i32
  }
}

module attributes {stable_mosaic.version = 11 : i64} {
  func.func @_transform_kernel(%arg0: i32, %arg1: memref<128x128xf32, #tpu.memory_space<vmem>>, %arg2: memref<128x1xf32, #tpu.memory_space<vmem>>, %arg3: memref<128x128xf32, #tpu.memory_space<vmem>>, %arg4: memref<128x128xf32, #tpu.memory_space<vmem>>) attributes {dimension_semantics = [#tpu.dimension_semantics<parallel>], iteration_bounds = array<i64: 1>, scalar_prefetch = 0 : i64, scratch_operands = 0 : i64, tpu.core_type = #tpu.core_type<tc>, window_params = [{transform_indices = @transform_0, window_bounds = array<i64: 128, 128>}, {transform_indices = @transform_1, window_bounds = array<i64: 128, 1>}, {pipeline_mode = #tpu.pipeline_mode<synchronous>, transform_indices = @transform_2, window_bounds = array<i64: 128, 128>}, {transform_indices = @transform_3, window_bounds = array<i64: 128, 128>}]} {
    %c0 = arith.constant 0 : index
    %c0_0 = arith.constant 0 : index
    %0 = vector.load %arg1[%c0, %c0_0] : memref<128x128xf32, #tpu.memory_space<vmem>>, vector<128x128xf32>
    %c0_1 = arith.constant 0 : index
    %c0_2 = arith.constant 0 : index
    %1 = vector.load %arg2[%c0_1, %c0_2] : memref<128x1xf32, #tpu.memory_space<vmem>>, vector<128x1xf32>
    %2 = vector.broadcast %1 : vector<128x1xf32> to vector<128x128xf32>
    %3 = arith.mulf %0, %2 : vector<128x128xf32>
    %c0_3 = arith.constant 0 : index
    %c0_4 = arith.constant 0 : index
    %4 = vector.load %arg3[%c0_3, %c0_4] : memref<128x128xf32, #tpu.memory_space<vmem>>, vector<128x128xf32>
    %cst = arith.constant dense<0.000000e+00> : vector<128x128xf32>
    %5 = tpu.matmul %3, %4, %cst {dimension_numbers = #tpu.dot_dimension_numbers<[1], [0], [0], [1], [0, 0, 1, 1], [], []>} : vector<128x128xf32>, vector<128x128xf32>, vector<128x128xf32> -> vector<128x128xf32>
    %c0_5 = arith.constant 0 : index
    %c0_6 = arith.constant 0 : index
    %6 = vector.load %arg4[%c0_5, %c0_6] : memref<128x128xf32, #tpu.memory_space<vmem>>, vector<128x128xf32>
    tpu.vector_store %arg4[%c0_5, %c0_6], %5 {strides = array<i32>} : memref<128x128xf32, #tpu.memory_space<vmem>>, vector<128x128xf32>,
    return
  }
  func.func @transform_0(%arg0: i32) -> (i32, i32) {
    %c0_i32 = arith.constant 0 : i32
    %c0_i32_0 = arith.constant 0 : i32
    return %arg0, %c0_i32 : i32, i32
  }
  func.func @transform_1(%arg0: i32) -> (i32, i32) {
    %c0_i32 = arith.constant 0 : i32
    %c0_i32_0 = arith.constant 0 : i32
    return %arg0, %c0_i32 : i32, i32
  }
  func.func @transform_2(%arg0: i32) -> (i32, i32) {
    %c0_i32 = arith.constant 0 : i32
    %c0_i32_0 = arith.constant 0 : i32
    %c0_i32_1 = arith.constant 0 : i32
    return %c0_i32, %c0_i32_0 : i32, i32
  }
  func.func @transform_3(%arg0: i32) -> (i32, i32) {
    %c0_i32 = arith.constant 0 : i32
    %c0_i32_0 = arith.constant 0 : i32
    return %arg0, %c0_i32 : i32, i32
  }
}

module attributes {stable_mosaic.version = 11 : i64} {
  func.func @kernel(%arg0: i32, %arg1: i32, %arg2: memref<128x128xf32, #tpu.memory_space<vmem>>, %arg3: memref<128x128xf32, #tpu.memory_space<vmem>>, %arg4: memref<128x1xf32, #tpu.memory_space<vmem>>, %arg5: memref<1x128xf32, #tpu.memory_space<vmem>>, %arg6: memref<128x128xf32, #tpu.memory_space<vmem>>, %arg7: memref<128x128xf32, #tpu.memory_space<vmem>>) attributes {dimension_semantics = [#tpu.dimension_semantics<parallel>, #tpu.dimension_semantics<arbitrary>], iteration_bounds = array<i64: 1, 1>, scalar_prefetch = 0 : i64, scratch_operands = 1 : i64, tpu.core_type = #tpu.core_type<tc>, window_params = [{transform_indices = @transform_0, window_bounds = array<i64: 128, 128>}, {pipeline_mode = #tpu.pipeline_mode<synchronous>, transform_indices = @transform_1, window_bounds = array<i64: 128, 128>}, {transform_indices = @transform_2, window_bounds = array<i64: 128, 1>}, {pipeline_mode = #tpu.pipeline_mode<synchronous>, transform_indices = @transform_3, window_bounds = array<i64: 1, 128>}, {transform_indices = @transform_4, window_bounds = array<i64: 128, 128>}]} {
    %c0_i32 = arith.constant 0 : i32
    %0 = arith.cmpi eq, %arg1, %c0_i32 : i32
    %1 = arith.extui %0 : i1 to i32
    %c0_i32_0 = arith.constant 0 : i32
    %2 = arith.cmpi ne, %1, %c0_i32_0 : i32
    scf.if %2 {
      %cst_9 = arith.constant 0.000000e+00 : f32
      %15 = vector.broadcast %cst_9 : f32 to vector<128x128xf32>
      %c0_10 = arith.constant 0 : index
      %c0_11 = arith.constant 0 : index
      %16 = vector.load %arg7[%c0_10, %c0_11] : memref<128x128xf32, #tpu.memory_space<vmem>>, vector<128x128xf32>
      tpu.vector_store %arg7[%c0_10, %c0_11], %15 {strides = array<i32>} : memref<128x128xf32, #tpu.memory_space<vmem>>, vector<128x128xf32>,
    } else {
    }
    %c128_i32 = arith.constant 128 : i32
    %3 = arith.muli %arg1, %c128_i32 : i32
    %4 = tpu.assume_multiple %3, 128 : i32
    %5 = arith.index_cast %4 : i32 to index
    %c0 = arith.constant 0 : index
    %6 = vector.load %arg3[%5, %c0] : memref<128x128xf32, #tpu.memory_space<vmem>>, vector<128x128xf32>
    %c0_1 = arith.constant 0 : index
    %c0_2 = arith.constant 0 : index
    %7 = vector.load %arg7[%c0_1, %c0_2] : memref<128x128xf32, #tpu.memory_space<vmem>>, vector<128x128xf32>
    %c0_3 = arith.constant 0 : index
    %c0_4 = arith.constant 0 : index
    %8 = vector.load %arg2[%c0_3, %c0_4] : memref<128x128xf32, #tpu.memory_space<vmem>>, vector<128x128xf32>
    %cst = arith.constant dense<0.000000e+00> : vector<128x128xf32>
    %9 = tpu.matmul %8, %6, %cst {dimension_numbers = #tpu.dot_dimension_numbers<[1], [0], [0], [1], [0, 0, 1, 1], [], []>} : vector<128x128xf32>, vector<128x128xf32>, vector<128x128xf32> -> vector<128x128xf32>
    %10 = arith.addf %7, %9 : vector<128x128xf32>
    %c0_5 = arith.constant 0 : index
    %c0_6 = arith.constant 0 : index
    %11 = vector.load %arg7[%c0_5, %c0_6] : memref<128x128xf32, #tpu.memory_space<vmem>>, vector<128x128xf32>
    tpu.vector_store %arg7[%c0_5, %c0_6], %10 {strides = array<i32>} : memref<128x128xf32, #tpu.memory_space<vmem>>, vector<128x128xf32>,
    %c0_i32_7 = arith.constant 0 : i32
    %12 = arith.cmpi eq, %arg1, %c0_i32_7 : i32
    %13 = arith.extui %12 : i1 to i32
    %c0_i32_8 = arith.constant 0 : i32
    %14 = arith.cmpi ne, %13, %c0_i32_8 : i32
    scf.if %14 {
      %c0_9 = arith.constant 0 : index
      %c0_10 = arith.constant 0 : index
      %15 = vector.load %arg7[%c0_9, %c0_10] : memref<128x128xf32, #tpu.memory_space<vmem>>, vector<128x128xf32>
      %c0_11 = arith.constant 0 : index
      %c0_12 = arith.constant 0 : index
      %16 = vector.load %arg4[%c0_11, %c0_12] : memref<128x1xf32, #tpu.memory_space<vmem>>, vector<128x1xf32>
      %17 = vector.broadcast %16 : vector<128x1xf32> to vector<128x128xf32>
      %18 = arith.mulf %15, %17 : vector<128x128xf32>
      %c0_13 = arith.constant 0 : index
      %c0_14 = arith.constant 0 : index
      %19 = vector.load %arg5[%c0_13, %c0_14] : memref<1x128xf32, #tpu.memory_space<vmem>>, vector<1x128xf32>
      %20 = vector.broadcast %19 : vector<1x128xf32> to vector<128x128xf32>
      %21 = arith.addf %18, %20 : vector<128x128xf32>
      %c0_15 = arith.constant 0 : index
      %c0_16 = arith.constant 0 : index
      %22 = vector.load %arg6[%c0_15, %c0_16] : memref<128x128xf32, #tpu.memory_space<vmem>>, vector<128x128xf32>
      tpu.vector_store %arg6[%c0_15, %c0_16], %21 {strides = array<i32>} : memref<128x128xf32, #tpu.memory_space<vmem>>, vector<128x128xf32>,
    } else {
    }
    return
  }
  func.func @transform_0(%arg0: i32, %arg1: i32) -> (i32, i32) {
    %c0_i32 = arith.constant 0 : i32
    return %arg0, %arg1 : i32, i32
  }
  func.func @transform_1(%arg0: i32, %arg1: i32) -> (i32, i32) {
    %c0_i32 = arith.constant 0 : i32
    %c0_i32_0 = arith.constant 0 : i32
    %c0_i32_1 = arith.constant 0 : i32
    return %c0_i32, %c0_i32_0 : i32, i32
  }
  func.func @transform_2(%arg0: i32, %arg1: i32) -> (i32, i32) {
    %c0_i32 = arith.constant 0 : i32
    %c0_i32_0 = arith.constant 0 : i32
    return %arg0, %c0_i32 : i32, i32
  }
  func.func @transform_3(%arg0: i32, %arg1: i32) -> (i32, i32) {
    %c0_i32 = arith.constant 0 : i32
    %c0_i32_0 = arith.constant 0 : i32
    %c0_i32_1 = arith.constant 0 : i32
    return %c0_i32, %c0_i32_0 : i32, i32
  }
  func.func @transform_4(%arg0: i32, %arg1: i32) -> (i32, i32) {
    %c0_i32 = arith.constant 0 : i32
    %c0_i32_0 = arith.constant 0 : i32
    return %arg0, %c0_i32 : i32, i32
  }
}

module attributes {stable_mosaic.version = 11 : i64} {
  func.func @kernel(%arg0: i32, %arg1: i32, %arg2: memref<128x128xf32, #tpu.memory_space<vmem>>, %arg3: memref<128x128xf32, #tpu.memory_space<vmem>>, %arg4: memref<128x1xf32, #tpu.memory_space<vmem>>, %arg5: memref<1x128xf32, #tpu.memory_space<vmem>>, %arg6: memref<128x1xf32, #tpu.memory_space<vmem>>, %arg7: memref<128x128xf32, #tpu.memory_space<vmem>>, %arg8: memref<128x128xf32, #tpu.memory_space<vmem>>, %arg9: memref<128x128xf32, #tpu.memory_space<vmem>>) attributes {dimension_semantics = [#tpu.dimension_semantics<parallel>, #tpu.dimension_semantics<arbitrary>], iteration_bounds = array<i64: 1, 1>, scalar_prefetch = 0 : i64, scratch_operands = 1 : i64, tpu.core_type = #tpu.core_type<tc>, window_params = [{transform_indices = @transform_0, window_bounds = array<i64: 128, 128>}, {pipeline_mode = #tpu.pipeline_mode<synchronous>, transform_indices = @transform_1, window_bounds = array<i64: 128, 128>}, {transform_indices = @transform_2, window_bounds = array<i64: 128, 1>}, {pipeline_mode = #tpu.pipeline_mode<synchronous>, transform_indices = @transform_3, window_bounds = array<i64: 1, 128>}, {transform_indices = @transform_4, window_bounds = array<i64: 128, 1>}, {pipeline_mode = #tpu.pipeline_mode<synchronous>, transform_indices = @transform_5, window_bounds = array<i64: 128, 128>}, {transform_indices = @transform_6, window_bounds = array<i64: 128, 128>}]} {
    %c0_i32 = arith.constant 0 : i32
    %0 = arith.cmpi eq, %arg1, %c0_i32 : i32
    %1 = arith.extui %0 : i1 to i32
    %c0_i32_0 = arith.constant 0 : i32
    %2 = arith.cmpi ne, %1, %c0_i32_0 : i32
    scf.if %2 {
      %cst_9 = arith.constant 0.000000e+00 : f32
      %15 = vector.broadcast %cst_9 : f32 to vector<128x128xf32>
      %c0_10 = arith.constant 0 : index
      %c0_11 = arith.constant 0 : index
      %16 = vector.load %arg9[%c0_10, %c0_11] : memref<128x128xf32, #tpu.memory_space<vmem>>, vector<128x128xf32>
      tpu.vector_store %arg9[%c0_10, %c0_11], %15 {strides = array<i32>} : memref<128x128xf32, #tpu.memory_space<vmem>>, vector<128x128xf32>,
    } else {
    }
    %c128_i32 = arith.constant 128 : i32
    %3 = arith.muli %arg1, %c128_i32 : i32
    %4 = tpu.assume_multiple %3, 128 : i32
    %5 = arith.index_cast %4 : i32 to index
    %c0 = arith.constant 0 : index
    %6 = vector.load %arg3[%5, %c0] : memref<128x128xf32, #tpu.memory_space<vmem>>, vector<128x128xf32>
    %c0_1 = arith.constant 0 : index
    %c0_2 = arith.constant 0 : index
    %7 = vector.load %arg9[%c0_1, %c0_2] : memref<128x128xf32, #tpu.memory_space<vmem>>, vector<128x128xf32>
    %c0_3 = arith.constant 0 : index
    %c0_4 = arith.constant 0 : index
    %8 = vector.load %arg2[%c0_3, %c0_4] : memref<128x128xf32, #tpu.memory_space<vmem>>, vector<128x128xf32>
    %cst = arith.constant dense<0.000000e+00> : vector<128x128xf32>
    %9 = tpu.matmul %8, %6, %cst {dimension_numbers = #tpu.dot_dimension_numbers<[1], [0], [0], [1], [0, 0, 1, 1], [], []>} : vector<128x128xf32>, vector<128x128xf32>, vector<128x128xf32> -> vector<128x128xf32>
    %10 = arith.addf %7, %9 : vector<128x128xf32>
    %c0_5 = arith.constant 0 : index
    %c0_6 = arith.constant 0 : index
    %11 = vector.load %arg9[%c0_5, %c0_6] : memref<128x128xf32, #tpu.memory_space<vmem>>, vector<128x128xf32>
    tpu.vector_store %arg9[%c0_5, %c0_6], %10 {strides = array<i32>} : memref<128x128xf32, #tpu.memory_space<vmem>>, vector<128x128xf32>,
    %c0_i32_7 = arith.constant 0 : i32
    %12 = arith.cmpi eq, %arg1, %c0_i32_7 : i32
    %13 = arith.extui %12 : i1 to i32
    %c0_i32_8 = arith.constant 0 : i32
    %14 = arith.cmpi ne, %13, %c0_i32_8 : i32
    scf.if %14 {
      %c0_9 = arith.constant 0 : index
      %c0_10 = arith.constant 0 : index
      %15 = vector.load %arg9[%c0_9, %c0_10] : memref<128x128xf32, #tpu.memory_space<vmem>>, vector<128x128xf32>
      %c0_11 = arith.constant 0 : index
      %c0_12 = arith.constant 0 : index
      %16 = vector.load %arg4[%c0_11, %c0_12] : memref<128x1xf32, #tpu.memory_space<vmem>>, vector<128x1xf32>
      %17 = vector.broadcast %16 : vector<128x1xf32> to vector<128x128xf32>
      %18 = arith.mulf %15, %17 : vector<128x128xf32>
      %c0_13 = arith.constant 0 : index
      %c0_14 = arith.constant 0 : index
      %19 = vector.load %arg5[%c0_13, %c0_14] : memref<1x128xf32, #tpu.memory_space<vmem>>, vector<1x128xf32>
      %20 = vector.broadcast %19 : vector<1x128xf32> to vector<128x128xf32>
      %21 = arith.addf %18, %20 : vector<128x128xf32>
      %c0_15 = arith.constant 0 : index
      %c0_16 = arith.constant 0 : index
      %22 = vector.load %arg6[%c0_15, %c0_16] : memref<128x1xf32, #tpu.memory_space<vmem>>, vector<128x1xf32>
      %23 = vector.broadcast %22 : vector<128x1xf32> to vector<128x128xf32>
      %24 = arith.mulf %21, %23 : vector<128x128xf32>
      %c0_17 = arith.constant 0 : index
      %c0_18 = arith.constant 0 : index
      %25 = vector.load %arg7[%c0_17, %c0_18] : memref<128x128xf32, #tpu.memory_space<vmem>>, vector<128x128xf32>
      %cst_19 = arith.constant dense<0.000000e+00> : vector<128x128xf32>
      %26 = tpu.matmul %24, %25, %cst_19 {dimension_numbers = #tpu.dot_dimension_numbers<[1], [0], [0], [1], [0, 0, 1, 1], [], []>} : vector<128x128xf32>, vector<128x128xf32>, vector<128x128xf32> -> vector<128x128xf32>
      %c0_20 = arith.constant 0 : index
      %c0_21 = arith.constant 0 : index
      %27 = vector.load %arg8[%c0_20, %c0_21] : memref<128x128xf32, #tpu.memory_space<vmem>>, vector<128x128xf32>
      tpu.vector_store %arg8[%c0_20, %c0_21], %26 {strides = array<i32>} : memref<128x128xf32, #tpu.memory_space<vmem>>, vector<128x128xf32>,
    } else {
    }
    return
  }
  func.func @transform_0(%arg0: i32, %arg1: i32) -> (i32, i32) {
    %c0_i32 = arith.constant 0 : i32
    return %arg0, %arg1 : i32, i32
  }
  func.func @transform_1(%arg0: i32, %arg1: i32) -> (i32, i32) {
    %c0_i32 = arith.constant 0 : i32
    %c0_i32_0 = arith.constant 0 : i32
    %c0_i32_1 = arith.constant 0 : i32
    return %c0_i32, %c0_i32_0 : i32, i32
  }
  func.func @transform_2(%arg0: i32, %arg1: i32) -> (i32, i32) {
    %c0_i32 = arith.constant 0 : i32
    %c0_i32_0 = arith.constant 0 : i32
    return %arg0, %c0_i32 : i32, i32
  }
  func.func @transform_3(%arg0: i32, %arg1: i32) -> (i32, i32) {
    %c0_i32 = arith.constant 0 : i32
    %c0_i32_0 = arith.constant 0 : i32
    %c0_i32_1 = arith.constant 0 : i32
    return %c0_i32, %c0_i32_0 : i32, i32
  }
  func.func @transform_4(%arg0: i32, %arg1: i32) -> (i32, i32) {
    %c0_i32 = arith.constant 0 : i32
    %c0_i32_0 = arith.constant 0 : i32
    return %arg0, %c0_i32 : i32, i32
  }
  func.func @transform_5(%arg0: i32, %arg1: i32) -> (i32, i32) {
    %c0_i32 = arith.constant 0 : i32
    %c0_i32_0 = arith.constant 0 : i32
    %c0_i32_1 = arith.constant 0 : i32
    return %c0_i32, %c0_i32_0 : i32, i32
  }
  func.func @transform_6(%arg0: i32, %arg1: i32) -> (i32, i32) {
    %c0_i32 = arith.constant 0 : i32
    %c0_i32_0 = arith.constant 0 : i32
    return %arg0, %c0_i32 : i32, i32
  }
}

module attributes {stable_mosaic.version = 11 : i64} {
  func.func @kernel(%arg0: i32, %arg1: i32, %arg2: memref<128x128xf32, #tpu.memory_space<vmem>>, %arg3: memref<128x128xf32, #tpu.memory_space<vmem>>, %arg4: memref<128x128xf32, #tpu.memory_space<vmem>>) attributes {dimension_semantics = [#tpu.dimension_semantics<parallel>, #tpu.dimension_semantics<parallel>], iteration_bounds = array<i64: 1, 1>, scalar_prefetch = 0 : i64, scratch_operands = 0 : i64, tpu.core_type = #tpu.core_type<tc>, window_params = [{transform_indices = @transform_0, window_bounds = array<i64: 128, 128>}, {pipeline_mode = #tpu.pipeline_mode<synchronous>, transform_indices = @transform_1, window_bounds = array<i64: 128, 128>}, {transform_indices = @transform_2, window_bounds = array<i64: 128, 128>}]} {
    %c128_i32 = arith.constant 128 : i32
    %0 = arith.muli %arg1, %c128_i32 : i32
    %1 = tpu.assume_multiple %0, 128 : i32
    %2 = arith.index_cast %1 : i32 to index
    %c0 = arith.constant 0 : index
    %3 = vector.load %arg3[%2, %c0] : memref<128x128xf32, #tpu.memory_space<vmem>>, vector<128x128xf32>
    %c0_0 = arith.constant 0 : index
    %c0_1 = arith.constant 0 : index
    %4 = vector.load %arg2[%c0_0, %c0_1] : memref<128x128xf32, #tpu.memory_space<vmem>>, vector<128x128xf32>
    %cst = arith.constant dense<0.000000e+00> : vector<128x128xf32>
    %5 = tpu.matmul %4, %3, %cst {dimension_numbers = #tpu.dot_dimension_numbers<[1], [1], [0], [0], [0, 0, 1, 0], [], []>} : vector<128x128xf32>, vector<128x128xf32>, vector<128x128xf32> -> vector<128x128xf32>
    %c0_2 = arith.constant 0 : index
    %c0_3 = arith.constant 0 : index
    %6 = vector.load %arg4[%c0_2, %c0_3] : memref<128x128xf32, #tpu.memory_space<vmem>>, vector<128x128xf32>
    tpu.vector_store %arg4[%c0_2, %c0_3], %5 {strides = array<i32>} : memref<128x128xf32, #tpu.memory_space<vmem>>, vector<128x128xf32>,
    return
  }
  func.func @transform_0(%arg0: i32, %arg1: i32) -> (i32, i32) {
    %c0_i32 = arith.constant 0 : i32
    %c0_i32_0 = arith.constant 0 : i32
    return %arg0, %c0_i32 : i32, i32
  }
  func.func @transform_1(%arg0: i32, %arg1: i32) -> (i32, i32) {
    %c0_i32 = arith.constant 0 : i32
    %c0_i32_0 = arith.constant 0 : i32
    %c0_i32_1 = arith.constant 0 : i32
    return %c0_i32, %c0_i32_0 : i32, i32
  }
  func.func @transform_2(%arg0: i32, %arg1: i32) -> (i32, i32) {
    %c0_i32 = arith.constant 0 : i32
    return %arg0, %arg1 : i32, i32
  }
}

</mosaic_0001>

<llo_original>
// kernel: gcnae_forward.5
$region0: #{gcnae_forward.5}
  #allocation0 [shape = 'u32[]', space=smem, size = 0x4, offset = 0x4, fixed_abs, tag = 'smem constant byte address 0x4 - core index']
  #allocation1 [shape = 'u32[72,128]{1,0:T(1,128)}', space=vmem, size = 0x9000, scoped, tag = 'internal scratch']
  #allocation2 [shape = 'f32[1,128]{1,0:T(1,128)}', space=vmem, size = 0x200, scoped, tag = 'scratch operand']
  %s0 = inlined_call_operand.vmem [shape: f32[128,128], index: 0, kind: input, shape index: {}]
  %s1 = inlined_call_operand.vmem [shape: f32[1,128], index: 1, kind: output, shape index: {0}]
  %s2 = inlined_call_operand.vmem [shape: f32[1,128,1], index: 2, kind: output, shape index: {1}]
  %3 = xla_tuple %s1, %s2
  %s4 = sld [smem:[#allocation0]]
  $region30: #{gcnae_forward.5} parent=0
    _
  %s6 = ssub.s32 1, %s4
  %s7 = scalar_select 0, %s6, %s4
  // Predicated region
  $region2: #{gcnae_forward.5} parent=0 // pred_check
    _
  $region3: #{gcnae_forward.5} parent=0 // pred_check_branch
    %9 = sbr.rel (0) target = $region5
  $region4: #{gcnae_forward.5} parent=0 // pred_region
    _
  $region5: #{gcnae_forward.5} parent=0 // pred_fallthru
    _
  %p10 = scmp.eq.s32.totalorder 0, 0
  // Predicated region
  $region6: #{gcnae_forward.5} parent=0 // pred_check
    %p11 = pneg %p10
  $region7: #{gcnae_forward.5} parent=0 // pred_check_branch
    %13 = sbr.rel (%p11) target = $region9
  $region8: #{gcnae_forward.5} parent=0 // pred_region
    %14 = vst [vmem:[#allocation2] sm:$0x1] 0.0
  $region9: #{gcnae_forward.5} parent=0 // pred_fallthru
    _
  %v15 = vld [vmem:[%s0] sm:$0xff]
  %v16 = vld [vmem:[%s0 + $0x8] sm:$0xff]
  %v17 = vld [vmem:[%s0 + $0x10] sm:$0xff]
  %v18 = vld [vmem:[%s0 + $0x18] sm:$0xff]
  %v19 = vld [vmem:[%s0 + $0x20] sm:$0xff]
  %v20 = vld [vmem:[%s0 + $0x28] sm:$0xff]
  %v21 = vld [vmem:[%s0 + $0x30] sm:$0xff]
  %v22 = vld [vmem:[%s0 + $0x38] sm:$0xff]
  %v23 = vld [vmem:[%s0 + $0x40] sm:$0xff]
  %v24 = vld [vmem:[%s0 + $0x48] sm:$0xff]
  %v25 = vld [vmem:[%s0 + $0x50] sm:$0xff]
  %v26 = vld [vmem:[%s0 + $0x58] sm:$0xff]
  %v27 = vld [vmem:[%s0 + $0x60] sm:$0xff]
  %v28 = vld [vmem:[%s0 + $0x68] sm:$0xff]
  %v29 = vld [vmem:[%s0 + $0x70] sm:$0xff]
  %v30 = vld [vmem:[%s0 + $0x78] sm:$0xff]
  %vm31 = vcmp.ne.f32.partialorder %v15, 0.0
  %vm32 = vcmp.ne.f32.partialorder %v16, 0.0
  %vm33 = vcmp.ne.f32.partialorder %v17, 0.0
  %vm34 = vcmp.ne.f32.partialorder %v18, 0.0
  %vm35 = vcmp.ne.f32.partialorder %v19, 0.0
  %vm36 = vcmp.ne.f32.partialorder %v20, 0.0
  %vm37 = vcmp.ne.f32.partialorder %v21, 0.0
  %vm38 = vcmp.ne.f32.partialorder %v22, 0.0
  %vm39 = vcmp.ne.f32.partialorder %v23, 0.0
  %vm40 = vcmp.ne.f32.partialorder %v24, 0.0
  %vm41 = vcmp.ne.f32.partialorder %v25, 0.0
  %vm42 = vcmp.ne.f32.partialorder %v26, 0.0
  %vm43 = vcmp.ne.f32.partialorder %v27, 0.0
  %vm44 = vcmp.ne.f32.partialorder %v28, 0.0
  %vm45 = vcmp.ne.f32.partialorder %v29, 0.0
  %vm46 = vcmp.ne.f32.partialorder %v30, 0.0
  %v47 = vsel %vm31, 1, 0
  %v48 = vsel %vm32, 1, 0
  %v49 = vsel %vm33, 1, 0
  %v50 = vsel %vm34, 1, 0
  %v51 = vsel %vm35, 1, 0
  %v52 = vsel %vm36, 1, 0
  %v53 = vsel %vm37, 1, 0
  %v54 = vsel %vm38, 1, 0
  %v55 = vsel %vm39, 1, 0
  %v56 = vsel %vm40, 1, 0
  %v57 = vsel %vm41, 1, 0
  %v58 = vsel %vm42, 1, 0
  %v59 = vsel %vm43, 1, 0
  %v60 = vsel %vm44, 1, 0
  %v61 = vsel %vm45, 1, 0
  %v62 = vsel %vm46, 1, 0
  %v63 = vcvt.s32.f32 %v47
  %v64 = vcvt.s32.f32 %v48
  %v65 = vcvt.s32.f32 %v49
  %v66 = vcvt.s32.f32 %v50
  %v67 = vcvt.s32.f32 %v51
  %v68 = vcvt.s32.f32 %v52
  %v69 = vcvt.s32.f32 %v53
  %v70 = vcvt.s32.f32 %v54
  %v71 = vcvt.s32.f32 %v55
  %v72 = vcvt.s32.f32 %v56
  %v73 = vcvt.s32.f32 %v57
  %v74 = vcvt.s32.f32 %v58
  %v75 = vcvt.s32.f32 %v59
  %v76 = vcvt.s32.f32 %v60
  %v77 = vcvt.s32.f32 %v61
  %v78 = vcvt.s32.f32 %v62
  %v79 = vld [vmem:[#allocation2] sm:$0x1]
  %v80 = vadd.f32 %v63, %v64
  %v81 = vadd.f32 %v80, %v65
  %v82 = vadd.f32 %v81, %v66
  %v83 = vadd.f32 %v82, %v67
  %v84 = vadd.f32 %v83, %v68
  %v85 = vadd.f32 %v84, %v69
  %v86 = vadd.f32 %v85, %v70
  %v87 = vadd.f32 %v86, %v71
  %v88 = vadd.f32 %v87, %v72
  %v89 = vadd.f32 %v88, %v73
  %v90 = vadd.f32 %v89, %v74
  %v91 = vadd.f32 %v90, %v75
  %v92 = vadd.f32 %v91, %v76
  %v93 = vadd.f32 %v92, %v77
  %v94 = vadd.f32 %v93, %v78
  %v95 = vrot.slane %v94, 4
  %v96 = vadd.f32 %v94, %v95
  %v97 = vrot.slane %v96, 2
  %v98 = vadd.f32 %v96, %v97
  %v99 = vrot.slane %v98, 1
  %v100 = vadd.f32 %v98, %v99
  %v101 = vadd.f32 %v79, %v100
  %102 = vst [vmem:[#allocation2] sm:$0x1] %v101
  %103 = vadd.xlane.f32.xlu0 %v63
  %v104 = vpop.xlane.xlu0 %103
  %105 = vadd.xlane.f32.xlu0 %v64
  %v106 = vpop.xlane.xlu0 %105
  %107 = vadd.xlane.f32.xlu0 %v65
  %v108 = vpop.xlane.xlu0 %107
  %109 = vadd.xlane.f32.xlu0 %v66
  %v110 = vpop.xlane.xlu0 %109
  %111 = vadd.xlane.f32.xlu0 %v67
  %v112 = vpop.xlane.xlu0 %111
  %113 = vadd.xlane.f32.xlu0 %v68
  %v114 = vpop.xlane.xlu0 %113
  %115 = vadd.xlane.f32.xlu0 %v69
  %v116 = vpop.xlane.xlu0 %115
  %117 = vadd.xlane.f32.xlu0 %v70
  %v118 = vpop.xlane.xlu0 %117
  %119 = vadd.xlane.f32.xlu0 %v71
  %v120 = vpop.xlane.xlu0 %119
  %121 = vadd.xlane.f32.xlu0 %v72
  %v122 = vpop.xlane.xlu0 %121
  %123 = vadd.xlane.f32.xlu0 %v73
  %v124 = vpop.xlane.xlu0 %123
  %125 = vadd.xlane.f32.xlu0 %v74
  %v126 = vpop.xlane.xlu0 %125
  %127 = vadd.xlane.f32.xlu0 %v75
  %v128 = vpop.xlane.xlu0 %127
  %129 = vadd.xlane.f32.xlu0 %v76
  %v130 = vpop.xlane.xlu0 %129
  %131 = vadd.xlane.f32.xlu0 %v77
  %v132 = vpop.xlane.xlu0 %131
  %133 = vadd.xlane.f32.xlu0 %v78
  %v134 = vpop.xlane.xlu0 %133
  %vm135 = vcmask 7168
  %136 = vst.msk [vmem:[%s2] sm:$0xff] %vm135, %v104
  %137 = vst.msk [vmem:[%s2 + $0x8] sm:$0xff] %vm135, %v106
  %138 = vst.msk [vmem:[%s2 + $0x10] sm:$0xff] %vm135, %v108
  %139 = vst.msk [vmem:[%s2 + $0x18] sm:$0xff] %vm135, %v110
  %140 = vst.msk [vmem:[%s2 + $0x20] sm:$0xff] %vm135, %v112
  %141 = vst.msk [vmem:[%s2 + $0x28] sm:$0xff] %vm135, %v114
  %142 = vst.msk [vmem:[%s2 + $0x30] sm:$0xff] %vm135, %v116
  %143 = vst.msk [vmem:[%s2 + $0x38] sm:$0xff] %vm135, %v118
  %144 = vst.msk [vmem:[%s2 + $0x40] sm:$0xff] %vm135, %v120
  %145 = vst.msk [vmem:[%s2 + $0x48] sm:$0xff] %vm135, %v122
  %146 = vst.msk [vmem:[%s2 + $0x50] sm:$0xff] %vm135, %v124
  %147 = vst.msk [vmem:[%s2 + $0x58] sm:$0xff] %vm135, %v126
  %148 = vst.msk [vmem:[%s2 + $0x60] sm:$0xff] %vm135, %v128
  %149 = vst.msk [vmem:[%s2 + $0x68] sm:$0xff] %vm135, %v130
  %150 = vst.msk [vmem:[%s2 + $0x70] sm:$0xff] %vm135, %v132
  %151 = vst.msk [vmem:[%s2 + $0x78] sm:$0xff] %vm135, %v134
  // Predicated region
  $region10: #{gcnae_forward.5} parent=0 // pred_check
    %p152 = pneg %p10
  $region11: #{gcnae_forward.5} parent=0 // pred_check_branch
    %154 = sbr.rel (%p152) target = $region13
  $region12: #{gcnae_forward.5} parent=0 // pred_region
    %v155 = vld [vmem:[#allocation2] sm:$0x1]
    %v156 = vmax.f32 %v155, 1.0
    %v157 = vrsqrt.pop %v156
    %v158 = vmul.f32 %v157, %v156
    %v159 = vmul.f32 %v158, %v157
    %v160 = vmul.f32 0.5, %v159
    %v161 = vsub.f32 1.5, %v160
    %v162 = vmul.f32 %v157, %v161
    %vm163 = vweird.f32 %v156
    %vm164 = vweird.f32 %v157
    %vm165 = vmor %vm163, %vm164
    %v166 = vsel %vm165, %v157, %v162
    %167 = vst [vmem:[%s1] sm:$0x1] %v166
  $region13: #{gcnae_forward.5} parent=0 // pred_fallthru
    _
  // Predicated region
  $region14: #{gcnae_forward.5} parent=0 // pred_check
    _
  $region15: #{gcnae_forward.5} parent=0 // pred_check_branch
    %169 = sbr.rel (0) target = $region17
  $region16: #{gcnae_forward.5} parent=0 // pred_region
    _
  $region17: #{gcnae_forward.5} parent=0 // pred_fallthru
    _
  // Predicated region
  $region18: #{gcnae_forward.5} parent=0 // pred_check
    _
  $region19: #{gcnae_forward.5} parent=0 // pred_check_branch
    %171 = sbr.rel (0) target = $region21
  $region20: #{gcnae_forward.5} parent=0 // pred_region
    _
  $region21: #{gcnae_forward.5} parent=0 // pred_fallthru
    _
  // Predicated region
  $region22: #{gcnae_forward.5} parent=0 // pred_check
    _
  $region23: #{gcnae_forward.5} parent=0 // pred_check_branch
    %173 = sbr.rel (0) target = $region25
  $region24: #{gcnae_forward.5} parent=0 // pred_region
    _
  $region25: #{gcnae_forward.5} parent=0 // pred_fallthru
    _
  // Predicated region
  $region26: #{gcnae_forward.5} parent=0 // pred_check
    _
  $region27: #{gcnae_forward.5} parent=0 // pred_check_branch
    %175 = sbr.rel (0) target = $region29
  $region28: #{gcnae_forward.5} parent=0 // pred_region
    _
  $region29: #{gcnae_forward.5} parent=0 // pred_fallthru
    _

// kernel: gcnae_forward.6
$region0: #{gcnae_forward.6}
  #allocation0 [shape = 'u32[]', space=smem, size = 0x4, offset = 0x4, fixed_abs, tag = 'smem constant byte address 0x4 - core index']
  #allocation1 [shape = 'u32[72,128]{1,0:T(1,128)}', space=vmem, size = 0x9000, scoped, tag = 'internal scratch']
  %s0 = inlined_call_operand.vmem [shape: f32[128,128], index: 0, kind: input, shape index: {}]
  %s1 = inlined_call_operand.vmem [shape: f32[128,1], index: 1, kind: input, shape index: {}]
  %s2 = inlined_call_operand.vmem [shape: f32[128,128], index: 2, kind: input, shape index: {}]
  %s3 = inlined_call_operand.vmem [shape: f32[128,128], index: 3, kind: output, shape index: {}]
  %s4 = sld [smem:[#allocation0]]
  $region22: #{gcnae_forward.6} parent=0
    _
  %s6 = ssub.s32 1, %s4
  %s7 = scalar_select 0, %s6, %s4
  // Predicated region
  $region2: #{gcnae_forward.6} parent=0 // pred_check
    _
  $region3: #{gcnae_forward.6} parent=0 // pred_check_branch
    %9 = sbr.rel (0) target = $region5
  $region4: #{gcnae_forward.6} parent=0 // pred_region
    _
  $region5: #{gcnae_forward.6} parent=0 // pred_fallthru
    _
  // Predicated region
  $region6: #{gcnae_forward.6} parent=0 // pred_check
    _
  $region7: #{gcnae_forward.6} parent=0 // pred_check_branch
    %11 = sbr.rel (0) target = $region9
  $region8: #{gcnae_forward.6} parent=0 // pred_region
    _
  $region9: #{gcnae_forward.6} parent=0 // pred_fallthru
    _
  // Predicated region
  $region10: #{gcnae_forward.6} parent=0 // pred_check
    _
  $region11: #{gcnae_forward.6} parent=0 // pred_check_branch
    %13 = sbr.rel (0) target = $region13
  $region12: #{gcnae_forward.6} parent=0 // pred_region
    _
  $region13: #{gcnae_forward.6} parent=0 // pred_fallthru
    _
  %v14 = vld [vmem:[%s0] sm:$0xff]
  %v15 = vld [vmem:[%s0 + $0x8] sm:$0xff]
  %v16 = vld [vmem:[%s0 + $0x10] sm:$0xff]
  %v17 = vld [vmem:[%s0 + $0x18] sm:$0xff]
  %v18 = vld [vmem:[%s0 + $0x20] sm:$0xff]
  %v19 = vld [vmem:[%s0 + $0x28] sm:$0xff]
  %v20 = vld [vmem:[%s0 + $0x30] sm:$0xff]
  %v21 = vld [vmem:[%s0 + $0x38] sm:$0xff]
  %v22 = vld [vmem:[%s0 + $0x40] sm:$0xff]
  %v23 = vld [vmem:[%s0 + $0x48] sm:$0xff]
  %v24 = vld [vmem:[%s0 + $0x50] sm:$0xff]
  %v25 = vld [vmem:[%s0 + $0x58] sm:$0xff]
  %v26 = vld [vmem:[%s0 + $0x60] sm:$0xff]
  %v27 = vld [vmem:[%s0 + $0x68] sm:$0xff]
  %v28 = vld [vmem:[%s0 + $0x70] sm:$0xff]
  %v29 = vld [vmem:[%s0 + $0x78] sm:$0xff]
  %v30 = vld [vmem:[%s1] sm:$0xff]
  %v31 = vld [vmem:[%s1 + $0x8] sm:$0xff]
  %v32 = vld [vmem:[%s1 + $0x10] sm:$0xff]
  %v33 = vld [vmem:[%s1 + $0x18] sm:$0xff]
  %v34 = vld [vmem:[%s1 + $0x20] sm:$0xff]
  %v35 = vld [vmem:[%s1 + $0x28] sm:$0xff]
  %v36 = vld [vmem:[%s1 + $0x30] sm:$0xff]
  %v37 = vld [vmem:[%s1 + $0x38] sm:$0xff]
  %v38 = vld [vmem:[%s1 + $0x40] sm:$0xff]
  %v39 = vld [vmem:[%s1 + $0x48] sm:$0xff]
  %v40 = vld [vmem:[%s1 + $0x50] sm:$0xff]
  %v41 = vld [vmem:[%s1 + $0x58] sm:$0xff]
  %v42 = vld [vmem:[%s1 + $0x60] sm:$0xff]
  %v43 = vld [vmem:[%s1 + $0x68] sm:$0xff]
  %v44 = vld [vmem:[%s1 + $0x70] sm:$0xff]
  %v45 = vld [vmem:[%s1 + $0x78] sm:$0xff]
  %47 = vset.pattern.permute.xlu0 0
  %48 = vperm.xlu0 %47, %v30
  %v49 = vpop.permute.xlu0 %48
  %52 = vset.pattern.permute.xlu0 0
  %53 = vperm.xlu0 %52, %v31
  %v54 = vpop.permute.xlu0 %53
  %57 = vset.pattern.permute.xlu0 0
  %58 = vperm.xlu0 %57, %v32
  %v59 = vpop.permute.xlu0 %58
  %62 = vset.pattern.permute.xlu0 0
  %63 = vperm.xlu0 %62, %v33
  %v64 = vpop.permute.xlu0 %63
  %67 = vset.pattern.permute.xlu0 0
  %68 = vperm.xlu0 %67, %v34
  %v69 = vpop.permute.xlu0 %68
  %72 = vset.pattern.permute.xlu0 0
  %73 = vperm.xlu0 %72, %v35
  %v74 = vpop.permute.xlu0 %73
  %77 = vset.pattern.permute.xlu0 0
  %78 = vperm.xlu0 %77, %v36
  %v79 = vpop.permute.xlu0 %78
  %82 = vset.pattern.permute.xlu0 0
  %83 = vperm.xlu0 %82, %v37
  %v84 = vpop.permute.xlu0 %83
  %87 = vset.pattern.permute.xlu0 0
  %88 = vperm.xlu0 %87, %v38
  %v89 = vpop.permute.xlu0 %88
  %92 = vset.pattern.permute.xlu0 0
  %93 = vperm.xlu0 %92, %v39
  %v94 = vpop.permute.xlu0 %93
  %97 = vset.pattern.permute.xlu0 0
  %98 = vperm.xlu0 %97, %v40
  %v99 = vpop.permute.xlu0 %98
  %102 = vset.pattern.permute.xlu0 0
  %103 = vperm.xlu0 %102, %v41
  %v104 = vpop.permute.xlu0 %103
  %107 = vset.pattern.permute.xlu0 0
  %108 = vperm.xlu0 %107, %v42
  %v109 = vpop.permute.xlu0 %108
  %112 = vset.pattern.permute.xlu0 0
  %113 = vperm.xlu0 %112, %v43
  %v114 = vpop.permute.xlu0 %113
  %117 = vset.pattern.permute.xlu0 0
  %118 = vperm.xlu0 %117, %v44
  %v119 = vpop.permute.xlu0 %118
  %122 = vset.pattern.permute.xlu0 0
  %123 = vperm.xlu0 %122, %v45
  %v124 = vpop.permute.xlu0 %123
  %v126 = vmul.f32 %v14, %v49
  %v127 = vmul.f32 %v15, %v54
  %v128 = vmul.f32 %v16, %v59
  %v129 = vmul.f32 %v17, %v64
  %v130 = vmul.f32 %v18, %v69
  %v131 = vmul.f32 %v19, %v74
  %v132 = vmul.f32 %v20, %v79
  %v133 = vmul.f32 %v21, %v84
  %v134 = vmul.f32 %v22, %v89
  %v135 = vmul.f32 %v23, %v94
  %v136 = vmul.f32 %v24, %v99
  %v137 = vmul.f32 %v25, %v104
  %v138 = vmul.f32 %v26, %v109
  %v139 = vmul.f32 %v27, %v114
  %v140 = vmul.f32 %v28, %v119
  %v141 = vmul.f32 %v29, %v124
  %v142 = vld [vmem:[%s2] sm:$0xff]
  %v143 = vld [vmem:[%s2 + $0x8] sm:$0xff]
  %v144 = vld [vmem:[%s2 + $0x10] sm:$0xff]
  %v145 = vld [vmem:[%s2 + $0x18] sm:$0xff]
  %v146 = vld [vmem:[%s2 + $0x20] sm:$0xff]
  %v147 = vld [vmem:[%s2 + $0x28] sm:$0xff]
  %v148 = vld [vmem:[%s2 + $0x30] sm:$0xff]
  %v149 = vld [vmem:[%s2 + $0x38] sm:$0xff]
  %v150 = vld [vmem:[%s2 + $0x40] sm:$0xff]
  %v151 = vld [vmem:[%s2 + $0x48] sm:$0xff]
  %v152 = vld [vmem:[%s2 + $0x50] sm:$0xff]
  %v153 = vld [vmem:[%s2 + $0x58] sm:$0xff]
  %v154 = vld [vmem:[%s2 + $0x60] sm:$0xff]
  %v155 = vld [vmem:[%s2 + $0x68] sm:$0xff]
  %v156 = vld [vmem:[%s2 + $0x70] sm:$0xff]
  %v157 = vld [vmem:[%s2 + $0x78] sm:$0xff]
  %158 = vmatpush.msra.mxu0 %v157
  %159 = vmatpush.msra.mxu0 %v156
  %160 = vmatpush.msra.mxu0 %v155
  %161 = vmatpush.msra.mxu0 %v154
  %162 = vmatpush.msra.mxu0 %v153
  %163 = vmatpush.msra.mxu0 %v152
  %164 = vmatpush.msra.mxu0 %v151
  %165 = vmatpush.msra.mxu0 %v150
  %166 = vmatpush.msra.mxu0 %v149
  %167 = vmatpush.msra.mxu0 %v148
  %168 = vmatpush.msra.mxu0 %v147
  %169 = vmatpush.msra.mxu0 %v146
  %170 = vmatpush.msra.mxu0 %v145
  %171 = vmatpush.msra.mxu0 %v144
  %172 = vmatpush.msra.mxu0 %v143
  %173 = vmatpush.msra.mxu0 %v142
  %174 = vmatmul.f32.gmra.mxu0 %v126
  %v175 = vpop.f32.mrf.mxu0
  %v176 = vadd.f32 0.0, %v175
  %177 = vmatmul.f32.gmra.mxu0 %v127
  %v178 = vpop.f32.mrf.mxu0
  %v179 = vadd.f32 0.0, %v178
  %180 = vmatmul.f32.gmra.mxu0 %v128
  %v181 = vpop.f32.mrf.mxu0
  %v182 = vadd.f32 0.0, %v181
  %183 = vmatmul.f32.gmra.mxu0 %v129
  %v184 = vpop.f32.mrf.mxu0
  %v185 = vadd.f32 0.0, %v184
  %186 = vmatmul.f32.gmra.mxu0 %v130
  %v187 = vpop.f32.mrf.mxu0
  %v188 = vadd.f32 0.0, %v187
  %189 = vmatmul.f32.gmra.mxu0 %v131
  %v190 = vpop.f32.mrf.mxu0
  %v191 = vadd.f32 0.0, %v190
  %192 = vmatmul.f32.gmra.mxu0 %v132
  %v193 = vpop.f32.mrf.mxu0
  %v194 = vadd.f32 0.0, %v193
  %195 = vmatmul.f32.gmra.mxu0 %v133
  %v196 = vpop.f32.mrf.mxu0
  %v197 = vadd.f32 0.0, %v196
  %198 = vmatmul.f32.gmra.mxu0 %v134
  %v199 = vpop.f32.mrf.mxu0
  %v200 = vadd.f32 0.0, %v199
  %201 = vmatmul.f32.gmra.mxu0 %v135
  %v202 = vpop.f32.mrf.mxu0
  %v203 = vadd.f32 0.0, %v202
  %204 = vmatmul.f32.gmra.mxu0 %v136
  %v205 = vpop.f32.mrf.mxu0
  %v206 = vadd.f32 0.0, %v205
  %207 = vmatmul.f32.gmra.mxu0 %v137
  %v208 = vpop.f32.mrf.mxu0
  %v209 = vadd.f32 0.0, %v208
  %210 = vmatmul.f32.gmra.mxu0 %v138
  %v211 = vpop.f32.mrf.mxu0
  %v212 = vadd.f32 0.0, %v211
  %213 = vmatmul.f32.gmra.mxu0 %v139
  %v214 = vpop.f32.mrf.mxu0
  %v215 = vadd.f32 0.0, %v214
  %216 = vmatmul.f32.gmra.mxu0 %v140
  %v217 = vpop.f32.mrf.mxu0
  %v218 = vadd.f32 0.0, %v217
  %219 = vmatmul.f32.gmra.mxu0 %v141
  %v220 = vpop.f32.mrf.mxu0
  %v221 = vadd.f32 0.0, %v220
  %222 = vdwg.mxu0
  %223 = vst [vmem:[%s3] sm:$0xff] %v176
  %224 = vst [vmem:[%s3 + $0x8] sm:$0xff] %v179
  %225 = vst [vmem:[%s3 + $0x10] sm:$0xff] %v182
  %226 = vst [vmem:[%s3 + $0x18] sm:$0xff] %v185
  %227 = vst [vmem:[%s3 + $0x20] sm:$0xff] %v188
  %228 = vst [vmem:[%s3 + $0x28] sm:$0xff] %v191
  %229 = vst [vmem:[%s3 + $0x30] sm:$0xff] %v194
  %230 = vst [vmem:[%s3 + $0x38] sm:$0xff] %v197
  %231 = vst [vmem:[%s3 + $0x40] sm:$0xff] %v200
  %232 = vst [vmem:[%s3 + $0x48] sm:$0xff] %v203
  %233 = vst [vmem:[%s3 + $0x50] sm:$0xff] %v206
  %234 = vst [vmem:[%s3 + $0x58] sm:$0xff] %v209
  %235 = vst [vmem:[%s3 + $0x60] sm:$0xff] %v212
  %236 = vst [vmem:[%s3 + $0x68] sm:$0xff] %v215
  %237 = vst [vmem:[%s3 + $0x70] sm:$0xff] %v218
  %238 = vst [vmem:[%s3 + $0x78] sm:$0xff] %v221
  // Predicated region
  $region14: #{gcnae_forward.6} parent=0 // pred_check
    _
  $region15: #{gcnae_forward.6} parent=0 // pred_check_branch
    %240 = sbr.rel (0) target = $region17
  $region16: #{gcnae_forward.6} parent=0 // pred_region
    _
  $region17: #{gcnae_forward.6} parent=0 // pred_fallthru
    _
  // Predicated region
  $region18: #{gcnae_forward.6} parent=0 // pred_check
    _
  $region19: #{gcnae_forward.6} parent=0 // pred_check_branch
    %242 = sbr.rel (0) target = $region21
  $region20: #{gcnae_forward.6} parent=0 // pred_region
    _
  $region21: #{gcnae_forward.6} parent=0 // pred_fallthru
    _

// kernel: gcnae_forward.8
$region0: #{gcnae_forward.8}
  #allocation0 [shape = 'u32[]', space=smem, size = 0x4, offset = 0x4, fixed_abs, tag = 'smem constant byte address 0x4 - core index']
  #allocation1 [shape = 'u32[72,128]{1,0:T(1,128)}', space=vmem, size = 0x9000, scoped, tag = 'internal scratch']
  #allocation2 [shape = 'f32[128,128]{1,0:T(8,128)}', space=vmem, size = 0x10000, scoped, tag = 'scratch operand']
  %s0 = inlined_call_operand.vmem [shape: f32[128,128], index: 0, kind: input, shape index: {}]
  %s1 = inlined_call_operand.vmem [shape: f32[128,128], index: 1, kind: input, shape index: {}]
  %s2 = inlined_call_operand.vmem [shape: f32[128,1], index: 2, kind: input, shape index: {}]
  %s3 = inlined_call_operand.vmem [shape: f32[1,128], index: 3, kind: input, shape index: {}]
  %s4 = inlined_call_operand.vmem [shape: f32[128,128], index: 4, kind: output, shape index: {}]
  %s5 = sld [smem:[#allocation0]]
  $region34: #{gcnae_forward.8} parent=0
    _
  %s7 = ssub.s32 1, %s5
  %s8 = scalar_select 0, %s7, %s5
  // Predicated region
  $region2: #{gcnae_forward.8} parent=0 // pred_check
    _
  $region3: #{gcnae_forward.8} parent=0 // pred_check_branch
    %10 = sbr.rel (0) target = $region5
  $region4: #{gcnae_forward.8} parent=0 // pred_region
    _
  $region5: #{gcnae_forward.8} parent=0 // pred_fallthru
    _
  // Predicated region
  $region6: #{gcnae_forward.8} parent=0 // pred_check
    _
  $region7: #{gcnae_forward.8} parent=0 // pred_check_branch
    %12 = sbr.rel (0) target = $region9
  $region8: #{gcnae_forward.8} parent=0 // pred_region
    _
  $region9: #{gcnae_forward.8} parent=0 // pred_fallthru
    _
  // Predicated region
  $region10: #{gcnae_forward.8} parent=0 // pred_check
    _
  $region11: #{gcnae_forward.8} parent=0 // pred_check_branch
    %14 = sbr.rel (0) target = $region13
  $region12: #{gcnae_forward.8} parent=0 // pred_region
    _
  $region13: #{gcnae_forward.8} parent=0 // pred_fallthru
    _
  // Predicated region
  $region14: #{gcnae_forward.8} parent=0 // pred_check
    _
  $region15: #{gcnae_forward.8} parent=0 // pred_check_branch
    %16 = sbr.rel (0) target = $region17
  $region16: #{gcnae_forward.8} parent=0 // pred_region
    _
  $region17: #{gcnae_forward.8} parent=0 // pred_fallthru
    _
  %p17 = scmp.eq.s32.totalorder 0, 0
  // Predicated region
  $region18: #{gcnae_forward.8} parent=0 // pred_check
    %p18 = pneg %p17
  $region19: #{gcnae_forward.8} parent=0 // pred_check_branch
    %20 = sbr.rel (%p18) target = $region21
  $region20: #{gcnae_forward.8} parent=0 // pred_region
    %21 = vst [vmem:[#allocation2] sm:$0xff] 0.0
    %22 = vst [vmem:[#allocation2 + $0x8] sm:$0xff] 0.0
    %23 = vst [vmem:[#allocation2 + $0x10] sm:$0xff] 0.0
    %24 = vst [vmem:[#allocation2 + $0x18] sm:$0xff] 0.0
    %25 = vst [vmem:[#allocation2 + $0x20] sm:$0xff] 0.0
    %26 = vst [vmem:[#allocation2 + $0x28] sm:$0xff] 0.0
    %27 = vst [vmem:[#allocation2 + $0x30] sm:$0xff] 0.0
    %28 = vst [vmem:[#allocation2 + $0x38] sm:$0xff] 0.0
    %29 = vst [vmem:[#allocation2 + $0x40] sm:$0xff] 0.0
    %30 = vst [vmem:[#allocation2 + $0x48] sm:$0xff] 0.0
    %31 = vst [vmem:[#allocation2 + $0x50] sm:$0xff] 0.0
    %32 = vst [vmem:[#allocation2 + $0x58] sm:$0xff] 0.0
    %33 = vst [vmem:[#allocation2 + $0x60] sm:$0xff] 0.0
    %34 = vst [vmem:[#allocation2 + $0x68] sm:$0xff] 0.0
    %35 = vst [vmem:[#allocation2 + $0x70] sm:$0xff] 0.0
    %36 = vst [vmem:[#allocation2 + $0x78] sm:$0xff] 0.0
  $region21: #{gcnae_forward.8} parent=0 // pred_fallthru
    _
  %s37 = smul.u32 0, 128
  %s38 = scalar_lea.vmem %s1, %s37
  %v39 = vld [vmem:[%s38] sm:$0xff]
  %v40 = vld [vmem:[%s38 + $0x8] sm:$0xff]
  %v41 = vld [vmem:[%s38 + $0x10] sm:$0xff]
  %v42 = vld [vmem:[%s38 + $0x18] sm:$0xff]
  %v43 = vld [vmem:[%s38 + $0x20] sm:$0xff]
  %v44 = vld [vmem:[%s38 + $0x28] sm:$0xff]
  %v45 = vld [vmem:[%s38 + $0x30] sm:$0xff]
  %v46 = vld [vmem:[%s38 + $0x38] sm:$0xff]
  %v47 = vld [vmem:[%s38 + $0x40] sm:$0xff]
  %v48 = vld [vmem:[%s38 + $0x48] sm:$0xff]
  %v49 = vld [vmem:[%s38 + $0x50] sm:$0xff]
  %v50 = vld [vmem:[%s38 + $0x58] sm:$0xff]
  %v51 = vld [vmem:[%s38 + $0x60] sm:$0xff]
  %v52 = vld [vmem:[%s38 + $0x68] sm:$0xff]
  %v53 = vld [vmem:[%s38 + $0x70] sm:$0xff]
  %v54 = vld [vmem:[%s38 + $0x78] sm:$0xff]
  %v55 = vld [vmem:[#allocation2] sm:$0xff]
  %v56 = vld [vmem:[#allocation2 + $0x8] sm:$0xff]
  %v57 = vld [vmem:[#allocation2 + $0x10] sm:$0xff]
  %v58 = vld [vmem:[#allocation2 + $0x18] sm:$0xff]
  %v59 = vld [vmem:[#allocation2 + $0x20] sm:$0xff]
  %v60 = vld [vmem:[#allocation2 + $0x28] sm:$0xff]
  %v61 = vld [vmem:[#allocation2 + $0x30] sm:$0xff]
  %v62 = vld [vmem:[#allocation2 + $0x38] sm:$0xff]
  %v63 = vld [vmem:[#allocation2 + $0x40] sm:$0xff]
  %v64 = vld [vmem:[#allocation2 + $0x48] sm:$0xff]
  %v65 = vld [vmem:[#allocation2 + $0x50] sm:$0xff]
  %v66 = vld [vmem:[#allocation2 + $0x58] sm:$0xff]
  %v67 = vld [vmem:[#allocation2 + $0x60] sm:$0xff]
  %v68 = vld [vmem:[#allocation2 + $0x68] sm:$0xff]
  %v69 = vld [vmem:[#allocation2 + $0x70] sm:$0xff]
  %v70 = vld [vmem:[#allocation2 + $0x78] sm:$0xff]
  %v71 = vld [vmem:[%s0] sm:$0xff]
  %v72 = vld [vmem:[%s0 + $0x8] sm:$0xff]
  %v73 = vld [vmem:[%s0 + $0x10] sm:$0xff]
  %v74 = vld [vmem:[%s0 + $0x18] sm:$0xff]
  %v75 = vld [vmem:[%s0 + $0x20] sm:$0xff]
  %v76 = vld [vmem:[%s0 + $0x28] sm:$0xff]
  %v77 = vld [vmem:[%s0 + $0x30] sm:$0xff]
  %v78 = vld [vmem:[%s0 + $0x38] sm:$0xff]
  %v79 = vld [vmem:[%s0 + $0x40] sm:$0xff]
  %v80 = vld [vmem:[%s0 + $0x48] sm:$0xff]
  %v81 = vld [vmem:[%s0 + $0x50] sm:$0xff]
  %v82 = vld [vmem:[%s0 + $0x58] sm:$0xff]
  %v83 = vld [vmem:[%s0 + $0x60] sm:$0xff]
  %v84 = vld [vmem:[%s0 + $0x68] sm:$0xff]
  %v85 = vld [vmem:[%s0 + $0x70] sm:$0xff]
  %v86 = vld [vmem:[%s0 + $0x78] sm:$0xff]
  %87 = vmatpush.msra.mxu0 %v54
  %88 = vmatpush.msra.mxu0 %v53
  %89 = vmatpush.msra.mxu0 %v52
  %90 = vmatpush.msra.mxu0 %v51
  %91 = vmatpush.msra.mxu0 %v50
  %92 = vmatpush.msra.mxu0 %v49
  %93 = vmatpush.msra.mxu0 %v48
  %94 = vmatpush.msra.mxu0 %v47
  %95 = vmatpush.msra.mxu0 %v46
  %96 = vmatpush.msra.mxu0 %v45
  %97 = vmatpush.msra.mxu0 %v44
  %98 = vmatpush.msra.mxu0 %v43
  %99 = vmatpush.msra.mxu0 %v42
  %100 = vmatpush.msra.mxu0 %v41
  %101 = vmatpush.msra.mxu0 %v40
  %102 = vmatpush.msra.mxu0 %v39
  %103 = vmatmul.f32.gmra.mxu0 %v71
  %v104 = vpop.f32.mrf.mxu0
  %v105 = vadd.f32 0.0, %v104
  %106 = vmatmul.f32.gmra.mxu0 %v72
  %v107 = vpop.f32.mrf.mxu0
  %v108 = vadd.f32 0.0, %v107
  %109 = vmatmul.f32.gmra.mxu0 %v73
  %v110 = vpop.f32.mrf.mxu0
  %v111 = vadd.f32 0.0, %v110
  %112 = vmatmul.f32.gmra.mxu0 %v74
  %v113 = vpop.f32.mrf.mxu0
  %v114 = vadd.f32 0.0, %v113
  %115 = vmatmul.f32.gmra.mxu0 %v75
  %v116 = vpop.f32.mrf.mxu0
  %v117 = vadd.f32 0.0, %v116
  %118 = vmatmul.f32.gmra.mxu0 %v76
  %v119 = vpop.f32.mrf.mxu0
  %v120 = vadd.f32 0.0, %v119
  %121 = vmatmul.f32.gmra.mxu0 %v77
  %v122 = vpop.f32.mrf.mxu0
  %v123 = vadd.f32 0.0, %v122
  %124 = vmatmul.f32.gmra.mxu0 %v78
  %v125 = vpop.f32.mrf.mxu0
  %v126 = vadd.f32 0.0, %v125
  %127 = vmatmul.f32.gmra.mxu0 %v79
  %v128 = vpop.f32.mrf.mxu0
  %v129 = vadd.f32 0.0, %v128
  %130 = vmatmul.f32.gmra.mxu0 %v80
  %v131 = vpop.f32.mrf.mxu0
  %v132 = vadd.f32 0.0, %v131
  %133 = vmatmul.f32.gmra.mxu0 %v81
  %v134 = vpop.f32.mrf.mxu0
  %v135 = vadd.f32 0.0, %v134
  %136 = vmatmul.f32.gmra.mxu0 %v82
  %v137 = vpop.f32.mrf.mxu0
  %v138 = vadd.f32 0.0, %v137
  %139 = vmatmul.f32.gmra.mxu0 %v83
  %v140 = vpop.f32.mrf.mxu0
  %v141 = vadd.f32 0.0, %v140
  %142 = vmatmul.f32.gmra.mxu0 %v84
  %v143 = vpop.f32.mrf.mxu0
  %v144 = vadd.f32 0.0, %v143
  %145 = vmatmul.f32.gmra.mxu0 %v85
  %v146 = vpop.f32.mrf.mxu0
  %v147 = vadd.f32 0.0, %v146
  %148 = vmatmul.f32.gmra.mxu0 %v86
  %v149 = vpop.f32.mrf.mxu0
  %v150 = vadd.f32 0.0, %v149
  %151 = vdwg.mxu0
  %v152 = vadd.f32 %v55, %v105
  %v153 = vadd.f32 %v56, %v108
  %v154 = vadd.f32 %v57, %v111
  %v155 = vadd.f32 %v58, %v114
  %v156 = vadd.f32 %v59, %v117
  %v157 = vadd.f32 %v60, %v120
  %v158 = vadd.f32 %v61, %v123
  %v159 = vadd.f32 %v62, %v126
  %v160 = vadd.f32 %v63, %v129
  %v161 = vadd.f32 %v64, %v132
  %v162 = vadd.f32 %v65, %v135
  %v163 = vadd.f32 %v66, %v138
  %v164 = vadd.f32 %v67, %v141
  %v165 = vadd.f32 %v68, %v144
  %v166 = vadd.f32 %v69, %v147
  %v167 = vadd.f32 %v70, %v150
  %168 = vst [vmem:[#allocation2] sm:$0xff] %v152
  %169 = vst [vmem:[#allocation2 + $0x8] sm:$0xff] %v153
  %170 = vst [vmem:[#allocation2 + $0x10] sm:$0xff] %v154
  %171 = vst [vmem:[#allocation2 + $0x18] sm:$0xff] %v155
  %172 = vst [vmem:[#allocation2 + $0x20] sm:$0xff] %v156
  %173 = vst [vmem:[#allocation2 + $0x28] sm:$0xff] %v157
  %174 = vst [vmem:[#allocation2 + $0x30] sm:$0xff] %v158
  %175 = vst [vmem:[#allocation2 + $0x38] sm:$0xff] %v159
  %176 = vst [vmem:[#allocation2 + $0x40] sm:$0xff] %v160
  %177 = vst [vmem:[#allocation2 + $0x48] sm:$0xff] %v161
  %178 = vst [vmem:[#allocation2 + $0x50] sm:$0xff] %v162
  %179 = vst [vmem:[#allocation2 + $0x58] sm:$0xff] %v163
  %180 = vst [vmem:[#allocation2 + $0x60] sm:$0xff] %v164
  %181 = vst [vmem:[#allocation2 + $0x68] sm:$0xff] %v165
  %182 = vst [vmem:[#allocation2 + $0x70] sm:$0xff] %v166
  %183 = vst [vmem:[#allocation2 + $0x78] sm:$0xff] %v167
  // Predicated region
  $region22: #{gcnae_forward.8} parent=0 // pred_check
    %p184 = pneg %p17
  $region23: #{gcnae_forward.8} parent=0 // pred_check_branch
    %186 = sbr.rel (%p184) target = $region25
  $region24: #{gcnae_forward.8} parent=0 // pred_region
    %v187 = vld [vmem:[#allocation2] sm:$0xff]
    %v188 = vld [vmem:[#allocation2 + $0x8] sm:$0xff]
    %v189 = vld [vmem:[#allocation2 + $0x10] sm:$0xff]
    %v190 = vld [vmem:[#allocation2 + $0x18] sm:$0xff]
    %v191 = vld [vmem:[#allocation2 + $0x20] sm:$0xff]
    %v192 = vld [vmem:[#allocation2 + $0x28] sm:$0xff]
    %v193 = vld [vmem:[#allocation2 + $0x30] sm:$0xff]
    %v194 = vld [vmem:[#allocation2 + $0x38] sm:$0xff]
    %v195 = vld [vmem:[#allocation2 + $0x40] sm:$0xff]
    %v196 = vld [vmem:[#allocation2 + $0x48] sm:$0xff]
    %v197 = vld [vmem:[#allocation2 + $0x50] sm:$0xff]
    %v198 = vld [vmem:[#allocation2 + $0x58] sm:$0xff]
    %v199 = vld [vmem:[#allocation2 + $0x60] sm:$0xff]
    %v200 = vld [vmem:[#allocation2 + $0x68] sm:$0xff]
    %v201 = vld [vmem:[#allocation2 + $0x70] sm:$0xff]
    %v202 = vld [vmem:[#allocation2 + $0x78] sm:$0xff]
    %v203 = vld [vmem:[%s2] sm:$0xff]
    %v204 = vld [vmem:[%s2 + $0x8] sm:$0xff]
    %v205 = vld [vmem:[%s2 + $0x10] sm:$0xff]
    %v206 = vld [vmem:[%s2 + $0x18] sm:$0xff]
    %v207 = vld [vmem:[%s2 + $0x20] sm:$0xff]
    %v208 = vld [vmem:[%s2 + $0x28] sm:$0xff]
    %v209 = vld [vmem:[%s2 + $0x30] sm:$0xff]
    %v210 = vld [vmem:[%s2 + $0x38] sm:$0xff]
    %v211 = vld [vmem:[%s2 + $0x40] sm:$0xff]
    %v212 = vld [vmem:[%s2 + $0x48] sm:$0xff]
    %v213 = vld [vmem:[%s2 + $0x50] sm:$0xff]
    %v214 = vld [vmem:[%s2 + $0x58] sm:$0xff]
    %v215 = vld [vmem:[%s2 + $0x60] sm:$0xff]
    %v216 = vld [vmem:[%s2 + $0x68] sm:$0xff]
    %v217 = vld [vmem:[%s2 + $0x70] sm:$0xff]
    %v218 = vld [vmem:[%s2 + $0x78] sm:$0xff]
    %220 = vset.pattern.permute.xlu0 0
    %221 = vperm.xlu0 %220, %v203
    %v222 = vpop.permute.xlu0 %221
    %225 = vset.pattern.permute.xlu0 0
    %226 = vperm.xlu0 %225, %v204
    %v227 = vpop.permute.xlu0 %226
    %230 = vset.pattern.permute.xlu0 0
    %231 = vperm.xlu0 %230, %v205
    %v232 = vpop.permute.xlu0 %231
    %235 = vset.pattern.permute.xlu0 0
    %236 = vperm.xlu0 %235, %v206
    %v237 = vpop.permute.xlu0 %236
    %240 = vset.pattern.permute.xlu0 0
    %241 = vperm.xlu0 %240, %v207
    %v242 = vpop.permute.xlu0 %241
    %245 = vset.pattern.permute.xlu0 0
    %246 = vperm.xlu0 %245, %v208
    %v247 = vpop.permute.xlu0 %246
    %250 = vset.pattern.permute.xlu0 0
    %251 = vperm.xlu0 %250, %v209
    %v252 = vpop.permute.xlu0 %251
    %255 = vset.pattern.permute.xlu0 0
    %256 = vperm.xlu0 %255, %v210
    %v257 = vpop.permute.xlu0 %256
    %260 = vset.pattern.permute.xlu0 0
    %261 = vperm.xlu0 %260, %v211
    %v262 = vpop.permute.xlu0 %261
    %265 = vset.pattern.permute.xlu0 0
    %266 = vperm.xlu0 %265, %v212
    %v267 = vpop.permute.xlu0 %266
    %270 = vset.pattern.permute.xlu0 0
    %271 = vperm.xlu0 %270, %v213
    %v272 = vpop.permute.xlu0 %271
    %275 = vset.pattern.permute.xlu0 0
    %276 = vperm.xlu0 %275, %v214
    %v277 = vpop.permute.xlu0 %276
    %280 = vset.pattern.permute.xlu0 0
    %281 = vperm.xlu0 %280, %v215
    %v282 = vpop.permute.xlu0 %281
    %285 = vset.pattern.permute.xlu0 0
    %286 = vperm.xlu0 %285, %v216
    %v287 = vpop.permute.xlu0 %286
    %290 = vset.pattern.permute.xlu0 0
    %291 = vperm.xlu0 %290, %v217
    %v292 = vpop.permute.xlu0 %291
    %295 = vset.pattern.permute.xlu0 0
    %296 = vperm.xlu0 %295, %v218
    %v297 = vpop.permute.xlu0 %296
    %v299 = vmul.f32 %v187, %v222
    %v300 = vmul.f32 %v188, %v227
    %v301 = vmul.f32 %v189, %v232
    %v302 = vmul.f32 %v190, %v237
    %v303 = vmul.f32 %v191, %v242
    %v304 = vmul.f32 %v192, %v247
    %v305 = vmul.f32 %v193, %v252
    %v306 = vmul.f32 %v194, %v257
    %v307 = vmul.f32 %v195, %v262
    %v308 = vmul.f32 %v196, %v267
    %v309 = vmul.f32 %v197, %v272
    %v310 = vmul.f32 %v198, %v277
    %v311 = vmul.f32 %v199, %v282
    %v312 = vmul.f32 %v200, %v287
    %v313 = vmul.f32 %v201, %v292
    %v314 = vmul.f32 %v202, %v297
    %v315 = vld [vmem:[%s3] sm:$0x1]
    %v317 = vperm.slane %v315, 0
    %v319 = vadd.f32 %v299, %v317
    %v320 = vadd.f32 %v300, %v317
    %v321 = vadd.f32 %v301, %v317
    %v322 = vadd.f32 %v302, %v317
    %v323 = vadd.f32 %v303, %v317
    %v324 = vadd.f32 %v304, %v317
    %v325 = vadd.f32 %v305, %v317
    %v326 = vadd.f32 %v306, %v317
    %v327 = vadd.f32 %v307, %v317
    %v328 = vadd.f32 %v308, %v317
    %v329 = vadd.f32 %v309, %v317
    %v330 = vadd.f32 %v310, %v317
    %v331 = vadd.f32 %v311, %v317
    %v332 = vadd.f32 %v312, %v317
    %v333 = vadd.f32 %v313, %v317
    %v334 = vadd.f32 %v314, %v317
    %335 = vst [vmem:[%s4] sm:$0xff] %v319
    %336 = vst [vmem:[%s4 + $0x8] sm:$0xff] %v320
    %337 = vst [vmem:[%s4 + $0x10] sm:$0xff] %v321
    %338 = vst [vmem:[%s4 + $0x18] sm:$0xff] %v322
    %339 = vst [vmem:[%s4 + $0x20] sm:$0xff] %v323
    %340 = vst [vmem:[%s4 + $0x28] sm:$0xff] %v324
    %341 = vst [vmem:[%s4 + $0x30] sm:$0xff] %v325
    %342 = vst [vmem:[%s4 + $0x38] sm:$0xff] %v326
    %343 = vst [vmem:[%s4 + $0x40] sm:$0xff] %v327
    %344 = vst [vmem:[%s4 + $0x48] sm:$0xff] %v328
    %345 = vst [vmem:[%s4 + $0x50] sm:$0xff] %v329
    %346 = vst [vmem:[%s4 + $0x58] sm:$0xff] %v330
    %347 = vst [vmem:[%s4 + $0x60] sm:$0xff] %v331
    %348 = vst [vmem:[%s4 + $0x68] sm:$0xff] %v332
    %349 = vst [vmem:[%s4 + $0x70] sm:$0xff] %v333
    %350 = vst [vmem:[%s4 + $0x78] sm:$0xff] %v334
  $region25: #{gcnae_forward.8} parent=0 // pred_fallthru
    _
  // Predicated region
  $region26: #{gcnae_forward.8} parent=0 // pred_check
    _
  $region27: #{gcnae_forward.8} parent=0 // pred_check_branch
    %352 = sbr.rel (0) target = $region29
  $region28: #{gcnae_forward.8} parent=0 // pred_region
    _
  $region29: #{gcnae_forward.8} parent=0 // pred_fallthru
    _
  // Predicated region
  $region30: #{gcnae_forward.8} parent=0 // pred_check
    _
  $region31: #{gcnae_forward.8} parent=0 // pred_check_branch
    %354 = sbr.rel (0) target = $region33
  $region32: #{gcnae_forward.8} parent=0 // pred_region
    _
  $region33: #{gcnae_forward.8} parent=0 // pred_fallthru
    _

// kernel: gcnae_forward.7
$region0: #{gcnae_forward.7}
  #allocation0 [shape = 'u32[]', space=smem, size = 0x4, offset = 0x4, fixed_abs, tag = 'smem constant byte address 0x4 - core index']
  #allocation1 [shape = 'u32[72,128]{1,0:T(1,128)}', space=vmem, size = 0x9000, scoped, tag = 'internal scratch']
  #allocation2 [shape = 'f32[128,128]{1,0:T(8,128)}', space=vmem, size = 0x10000, scoped, tag = 'scratch operand']
  %s0 = inlined_call_operand.vmem [shape: f32[128,128], index: 0, kind: input, shape index: {}]
  %s1 = inlined_call_operand.vmem [shape: f32[128,128], index: 1, kind: input, shape index: {}]
  %s2 = inlined_call_operand.vmem [shape: f32[128,1], index: 2, kind: input, shape index: {}]
  %s3 = inlined_call_operand.vmem [shape: f32[1,128], index: 3, kind: input, shape index: {}]
  %s4 = inlined_call_operand.vmem [shape: f32[128,1], index: 4, kind: input, shape index: {}]
  %s5 = inlined_call_operand.vmem [shape: f32[128,128], index: 5, kind: input, shape index: {}]
  %s6 = inlined_call_operand.vmem [shape: f32[128,128], index: 6, kind: output, shape index: {}]
  %s7 = sld [smem:[#allocation0]]
  $region42: #{gcnae_forward.7} parent=0
    _
  %s9 = ssub.s32 1, %s7
  %s10 = scalar_select 0, %s9, %s7
  // Predicated region
  $region2: #{gcnae_forward.7} parent=0 // pred_check
    _
  $region3: #{gcnae_forward.7} parent=0 // pred_check_branch
    %12 = sbr.rel (0) target = $region5
  $region4: #{gcnae_forward.7} parent=0 // pred_region
    _
  $region5: #{gcnae_forward.7} parent=0 // pred_fallthru
    _
  // Predicated region
  $region6: #{gcnae_forward.7} parent=0 // pred_check
    _
  $region7: #{gcnae_forward.7} parent=0 // pred_check_branch
    %14 = sbr.rel (0) target = $region9
  $region8: #{gcnae_forward.7} parent=0 // pred_region
    _
  $region9: #{gcnae_forward.7} parent=0 // pred_fallthru
    _
  // Predicated region
  $region10: #{gcnae_forward.7} parent=0 // pred_check
    _
  $region11: #{gcnae_forward.7} parent=0 // pred_check_branch
    %16 = sbr.rel (0) target = $region13
  $region12: #{gcnae_forward.7} parent=0 // pred_region
    _
  $region13: #{gcnae_forward.7} parent=0 // pred_fallthru
    _
  // Predicated region
  $region14: #{gcnae_forward.7} parent=0 // pred_check
    _
  $region15: #{gcnae_forward.7} parent=0 // pred_check_branch
    %18 = sbr.rel (0) target = $region17
  $region16: #{gcnae_forward.7} parent=0 // pred_region
    _
  $region17: #{gcnae_forward.7} parent=0 // pred_fallthru
    _
  // Predicated region
  $region18: #{gcnae_forward.7} parent=0 // pred_check
    _
  $region19: #{gcnae_forward.7} parent=0 // pred_check_branch
    %20 = sbr.rel (0) target = $region21
  $region20: #{gcnae_forward.7} parent=0 // pred_region
    _
  $region21: #{gcnae_forward.7} parent=0 // pred_fallthru
    _
  // Predicated region
  $region22: #{gcnae_forward.7} parent=0 // pred_check
    _
  $region23: #{gcnae_forward.7} parent=0 // pred_check_branch
    %22 = sbr.rel (0) target = $region25
  $region24: #{gcnae_forward.7} parent=0 // pred_region
    _
  $region25: #{gcnae_forward.7} parent=0 // pred_fallthru
    _
  %p23 = scmp.eq.s32.totalorder 0, 0
  // Predicated region
  $region26: #{gcnae_forward.7} parent=0 // pred_check
    %p24 = pneg %p23
  $region27: #{gcnae_forward.7} parent=0 // pred_check_branch
    %26 = sbr.rel (%p24) target = $region29
  $region28: #{gcnae_forward.7} parent=0 // pred_region
    %27 = vst [vmem:[#allocation2] sm:$0xff] 0.0
    %28 = vst [vmem:[#allocation2 + $0x8] sm:$0xff] 0.0
    %29 = vst [vmem:[#allocation2 + $0x10] sm:$0xff] 0.0
    %30 = vst [vmem:[#allocation2 + $0x18] sm:$0xff] 0.0
    %31 = vst [vmem:[#allocation2 + $0x20] sm:$0xff] 0.0
    %32 = vst [vmem:[#allocation2 + $0x28] sm:$0xff] 0.0
    %33 = vst [vmem:[#allocation2 + $0x30] sm:$0xff] 0.0
    %34 = vst [vmem:[#allocation2 + $0x38] sm:$0xff] 0.0
    %35 = vst [vmem:[#allocation2 + $0x40] sm:$0xff] 0.0
    %36 = vst [vmem:[#allocation2 + $0x48] sm:$0xff] 0.0
    %37 = vst [vmem:[#allocation2 + $0x50] sm:$0xff] 0.0
    %38 = vst [vmem:[#allocation2 + $0x58] sm:$0xff] 0.0
    %39 = vst [vmem:[#allocation2 + $0x60] sm:$0xff] 0.0
    %40 = vst [vmem:[#allocation2 + $0x68] sm:$0xff] 0.0
    %41 = vst [vmem:[#allocation2 + $0x70] sm:$0xff] 0.0
    %42 = vst [vmem:[#allocation2 + $0x78] sm:$0xff] 0.0
  $region29: #{gcnae_forward.7} parent=0 // pred_fallthru
    _
  %s43 = smul.u32 0, 128
  %s44 = scalar_lea.vmem %s1, %s43
  %v45 = vld [vmem:[%s44] sm:$0xff]
  %v46 = vld [vmem:[%s44 + $0x8] sm:$0xff]
  %v47 = vld [vmem:[%s44 + $0x10] sm:$0xff]
  %v48 = vld [vmem:[%s44 + $0x18] sm:$0xff]
  %v49 = vld [vmem:[%s44 + $0x20] sm:$0xff]
  %v50 = vld [vmem:[%s44 + $0x28] sm:$0xff]
  %v51 = vld [vmem:[%s44 + $0x30] sm:$0xff]
  %v52 = vld [vmem:[%s44 + $0x38] sm:$0xff]
  %v53 = vld [vmem:[%s44 + $0x40] sm:$0xff]
  %v54 = vld [vmem:[%s44 + $0x48] sm:$0xff]
  %v55 = vld [vmem:[%s44 + $0x50] sm:$0xff]
  %v56 = vld [vmem:[%s44 + $0x58] sm:$0xff]
  %v57 = vld [vmem:[%s44 + $0x60] sm:$0xff]
  %v58 = vld [vmem:[%s44 + $0x68] sm:$0xff]
  %v59 = vld [vmem:[%s44 + $0x70] sm:$0xff]
  %v60 = vld [vmem:[%s44 + $0x78] sm:$0xff]
  %v61 = vld [vmem:[#allocation2] sm:$0xff]
  %v62 = vld [vmem:[#allocation2 + $0x8] sm:$0xff]
  %v63 = vld [vmem:[#allocation2 + $0x10] sm:$0xff]
  %v64 = vld [vmem:[#allocation2 + $0x18] sm:$0xff]
  %v65 = vld [vmem:[#allocation2 + $0x20] sm:$0xff]
  %v66 = vld [vmem:[#allocation2 + $0x28] sm:$0xff]
  %v67 = vld [vmem:[#allocation2 + $0x30] sm:$0xff]
  %v68 = vld [vmem:[#allocation2 + $0x38] sm:$0xff]
  %v69 = vld [vmem:[#allocation2 + $0x40] sm:$0xff]
  %v70 = vld [vmem:[#allocation2 + $0x48] sm:$0xff]
  %v71 = vld [vmem:[#allocation2 + $0x50] sm:$0xff]
  %v72 = vld [vmem:[#allocation2 + $0x58] sm:$0xff]
  %v73 = vld [vmem:[#allocation2 + $0x60] sm:$0xff]
  %v74 = vld [vmem:[#allocation2 + $0x68] sm:$0xff]
  %v75 = vld [vmem:[#allocation2 + $0x70] sm:$0xff]
  %v76 = vld [vmem:[#allocation2 + $0x78] sm:$0xff]
  %v77 = vld [vmem:[%s0] sm:$0xff]
  %v78 = vld [vmem:[%s0 + $0x8] sm:$0xff]
  %v79 = vld [vmem:[%s0 + $0x10] sm:$0xff]
  %v80 = vld [vmem:[%s0 + $0x18] sm:$0xff]
  %v81 = vld [vmem:[%s0 + $0x20] sm:$0xff]
  %v82 = vld [vmem:[%s0 + $0x28] sm:$0xff]
  %v83 = vld [vmem:[%s0 + $0x30] sm:$0xff]
  %v84 = vld [vmem:[%s0 + $0x38] sm:$0xff]
  %v85 = vld [vmem:[%s0 + $0x40] sm:$0xff]
  %v86 = vld [vmem:[%s0 + $0x48] sm:$0xff]
  %v87 = vld [vmem:[%s0 + $0x50] sm:$0xff]
  %v88 = vld [vmem:[%s0 + $0x58] sm:$0xff]
  %v89 = vld [vmem:[%s0 + $0x60] sm:$0xff]
  %v90 = vld [vmem:[%s0 + $0x68] sm:$0xff]
  %v91 = vld [vmem:[%s0 + $0x70] sm:$0xff]
  %v92 = vld [vmem:[%s0 + $0x78] sm:$0xff]
  %93 = vmatpush.msra.mxu0 %v60
  %94 = vmatpush.msra.mxu0 %v59
  %95 = vmatpush.msra.mxu0 %v58
  %96 = vmatpush.msra.mxu0 %v57
  %97 = vmatpush.msra.mxu0 %v56
  %98 = vmatpush.msra.mxu0 %v55
  %99 = vmatpush.msra.mxu0 %v54
  %100 = vmatpush.msra.mxu0 %v53
  %101 = vmatpush.msra.mxu0 %v52
  %102 = vmatpush.msra.mxu0 %v51
  %103 = vmatpush.msra.mxu0 %v50
  %104 = vmatpush.msra.mxu0 %v49
  %105 = vmatpush.msra.mxu0 %v48
  %106 = vmatpush.msra.mxu0 %v47
  %107 = vmatpush.msra.mxu0 %v46
  %108 = vmatpush.msra.mxu0 %v45
  %109 = vmatmul.f32.gmra.mxu0 %v77
  %v110 = vpop.f32.mrf.mxu0
  %v111 = vadd.f32 0.0, %v110
  %112 = vmatmul.f32.gmra.mxu0 %v78
  %v113 = vpop.f32.mrf.mxu0
  %v114 = vadd.f32 0.0, %v113
  %115 = vmatmul.f32.gmra.mxu0 %v79
  %v116 = vpop.f32.mrf.mxu0
  %v117 = vadd.f32 0.0, %v116
  %118 = vmatmul.f32.gmra.mxu0 %v80
  %v119 = vpop.f32.mrf.mxu0
  %v120 = vadd.f32 0.0, %v119
  %121 = vmatmul.f32.gmra.mxu0 %v81
  %v122 = vpop.f32.mrf.mxu0
  %v123 = vadd.f32 0.0, %v122
  %124 = vmatmul.f32.gmra.mxu0 %v82
  %v125 = vpop.f32.mrf.mxu0
  %v126 = vadd.f32 0.0, %v125
  %127 = vmatmul.f32.gmra.mxu0 %v83
  %v128 = vpop.f32.mrf.mxu0
  %v129 = vadd.f32 0.0, %v128
  %130 = vmatmul.f32.gmra.mxu0 %v84
  %v131 = vpop.f32.mrf.mxu0
  %v132 = vadd.f32 0.0, %v131
  %133 = vmatmul.f32.gmra.mxu0 %v85
  %v134 = vpop.f32.mrf.mxu0
  %v135 = vadd.f32 0.0, %v134
  %136 = vmatmul.f32.gmra.mxu0 %v86
  %v137 = vpop.f32.mrf.mxu0
  %v138 = vadd.f32 0.0, %v137
  %139 = vmatmul.f32.gmra.mxu0 %v87
  %v140 = vpop.f32.mrf.mxu0
  %v141 = vadd.f32 0.0, %v140
  %142 = vmatmul.f32.gmra.mxu0 %v88
  %v143 = vpop.f32.mrf.mxu0
  %v144 = vadd.f32 0.0, %v143
  %145 = vmatmul.f32.gmra.mxu0 %v89
  %v146 = vpop.f32.mrf.mxu0
  %v147 = vadd.f32 0.0, %v146
  %148 = vmatmul.f32.gmra.mxu0 %v90
  %v149 = vpop.f32.mrf.mxu0
  %v150 = vadd.f32 0.0, %v149
  %151 = vmatmul.f32.gmra.mxu0 %v91
  %v152 = vpop.f32.mrf.mxu0
  %v153 = vadd.f32 0.0, %v152
  %154 = vmatmul.f32.gmra.mxu0 %v92
  %v155 = vpop.f32.mrf.mxu0
  %v156 = vadd.f32 0.0, %v155
  %157 = vdwg.mxu0
  %v158 = vadd.f32 %v61, %v111
  %v159 = vadd.f32 %v62, %v114
  %v160 = vadd.f32 %v63, %v117
  %v161 = vadd.f32 %v64, %v120
  %v162 = vadd.f32 %v65, %v123
  %v163 = vadd.f32 %v66, %v126
  %v164 = vadd.f32 %v67, %v129
  %v165 = vadd.f32 %v68, %v132
  %v166 = vadd.f32 %v69, %v135
  %v167 = vadd.f32 %v70, %v138
  %v168 = vadd.f32 %v71, %v141
  %v169 = vadd.f32 %v72, %v144
  %v170 = vadd.f32 %v73, %v147
  %v171 = vadd.f32 %v74, %v150
  %v172 = vadd.f32 %v75, %v153
  %v173 = vadd.f32 %v76, %v156
  %174 = vst [vmem:[#allocation2] sm:$0xff] %v158
  %175 = vst [vmem:[#allocation2 + $0x8] sm:$0xff] %v159
  %176 = vst [vmem:[#allocation2 + $0x10] sm:$0xff] %v160
  %177 = vst [vmem:[#allocation2 + $0x18] sm:$0xff] %v161
  %178 = vst [vmem:[#allocation2 + $0x20] sm:$0xff] %v162
  %179 = vst [vmem:[#allocation2 + $0x28] sm:$0xff] %v163
  %180 = vst [vmem:[#allocation2 + $0x30] sm:$0xff] %v164
  %181 = vst [vmem:[#allocation2 + $0x38] sm:$0xff] %v165
  %182 = vst [vmem:[#allocation2 + $0x40] sm:$0xff] %v166
  %183 = vst [vmem:[#allocation2 + $0x48] sm:$0xff] %v167
  %184 = vst [vmem:[#allocation2 + $0x50] sm:$0xff] %v168
  %185 = vst [vmem:[#allocation2 + $0x58] sm:$0xff] %v169
  %186 = vst [vmem:[#allocation2 + $0x60] sm:$0xff] %v170
  %187 = vst [vmem:[#allocation2 + $0x68] sm:$0xff] %v171
  %188 = vst [vmem:[#allocation2 + $0x70] sm:$0xff] %v172
  %189 = vst [vmem:[#allocation2 + $0x78] sm:$0xff] %v173
  // Predicated region
  $region30: #{gcnae_forward.7} parent=0 // pred_check
    %p190 = pneg %p23
  $region31: #{gcnae_forward.7} parent=0 // pred_check_branch
    %192 = sbr.rel (%p190) target = $region33
  $region32: #{gcnae_forward.7} parent=0 // pred_region
    %v193 = vld [vmem:[#allocation2] sm:$0xff]
    %v194 = vld [vmem:[#allocation2 + $0x8] sm:$0xff]
    %v195 = vld [vmem:[#allocation2 + $0x10] sm:$0xff]
    %v196 = vld [vmem:[#allocation2 + $0x18] sm:$0xff]
    %v197 = vld [vmem:[#allocation2 + $0x20] sm:$0xff]
    %v198 = vld [vmem:[#allocation2 + $0x28] sm:$0xff]
    %v199 = vld [vmem:[#allocation2 + $0x30] sm:$0xff]
    %v200 = vld [vmem:[#allocation2 + $0x38] sm:$0xff]
    %v201 = vld [vmem:[#allocation2 + $0x40] sm:$0xff]
    %v202 = vld [vmem:[#allocation2 + $0x48] sm:$0xff]
    %v203 = vld [vmem:[#allocation2 + $0x50] sm:$0xff]
    %v204 = vld [vmem:[#allocation2 + $0x58] sm:$0xff]
    %v205 = vld [vmem:[#allocation2 + $0x60] sm:$0xff]
    %v206 = vld [vmem:[#allocation2 + $0x68] sm:$0xff]
    %v207 = vld [vmem:[#allocation2 + $0x70] sm:$0xff]
    %v208 = vld [vmem:[#allocation2 + $0x78] sm:$0xff]
    %v209 = vld [vmem:[%s2] sm:$0xff]
    %v210 = vld [vmem:[%s2 + $0x8] sm:$0xff]
    %v211 = vld [vmem:[%s2 + $0x10] sm:$0xff]
    %v212 = vld [vmem:[%s2 + $0x18] sm:$0xff]
    %v213 = vld [vmem:[%s2 + $0x20] sm:$0xff]
    %v214 = vld [vmem:[%s2 + $0x28] sm:$0xff]
    %v215 = vld [vmem:[%s2 + $0x30] sm:$0xff]
    %v216 = vld [vmem:[%s2 + $0x38] sm:$0xff]
    %v217 = vld [vmem:[%s2 + $0x40] sm:$0xff]
    %v218 = vld [vmem:[%s2 + $0x48] sm:$0xff]
    %v219 = vld [vmem:[%s2 + $0x50] sm:$0xff]
    %v220 = vld [vmem:[%s2 + $0x58] sm:$0xff]
    %v221 = vld [vmem:[%s2 + $0x60] sm:$0xff]
    %v222 = vld [vmem:[%s2 + $0x68] sm:$0xff]
    %v223 = vld [vmem:[%s2 + $0x70] sm:$0xff]
    %v224 = vld [vmem:[%s2 + $0x78] sm:$0xff]
    %226 = vset.pattern.permute.xlu0 0
    %227 = vperm.xlu0 %226, %v209
    %v228 = vpop.permute.xlu0 %227
    %231 = vset.pattern.permute.xlu0 0
    %232 = vperm.xlu0 %231, %v210
    %v233 = vpop.permute.xlu0 %232
    %236 = vset.pattern.permute.xlu0 0
    %237 = vperm.xlu0 %236, %v211
    %v238 = vpop.permute.xlu0 %237
    %241 = vset.pattern.permute.xlu0 0
    %242 = vperm.xlu0 %241, %v212
    %v243 = vpop.permute.xlu0 %242
    %246 = vset.pattern.permute.xlu0 0
    %247 = vperm.xlu0 %246, %v213
    %v248 = vpop.permute.xlu0 %247
    %251 = vset.pattern.permute.xlu0 0
    %252 = vperm.xlu0 %251, %v214
    %v253 = vpop.permute.xlu0 %252
    %256 = vset.pattern.permute.xlu0 0
    %257 = vperm.xlu0 %256, %v215
    %v258 = vpop.permute.xlu0 %257
    %261 = vset.pattern.permute.xlu0 0
    %262 = vperm.xlu0 %261, %v216
    %v263 = vpop.permute.xlu0 %262
    %266 = vset.pattern.permute.xlu0 0
    %267 = vperm.xlu0 %266, %v217
    %v268 = vpop.permute.xlu0 %267
    %271 = vset.pattern.permute.xlu0 0
    %272 = vperm.xlu0 %271, %v218
    %v273 = vpop.permute.xlu0 %272
    %276 = vset.pattern.permute.xlu0 0
    %277 = vperm.xlu0 %276, %v219
    %v278 = vpop.permute.xlu0 %277
    %281 = vset.pattern.permute.xlu0 0
    %282 = vperm.xlu0 %281, %v220
    %v283 = vpop.permute.xlu0 %282
    %286 = vset.pattern.permute.xlu0 0
    %287 = vperm.xlu0 %286, %v221
    %v288 = vpop.permute.xlu0 %287
    %291 = vset.pattern.permute.xlu0 0
    %292 = vperm.xlu0 %291, %v222
    %v293 = vpop.permute.xlu0 %292
    %296 = vset.pattern.permute.xlu0 0
    %297 = vperm.xlu0 %296, %v223
    %v298 = vpop.permute.xlu0 %297
    %301 = vset.pattern.permute.xlu0 0
    %302 = vperm.xlu0 %301, %v224
    %v303 = vpop.permute.xlu0 %302
    %v305 = vmul.f32 %v193, %v228
    %v306 = vmul.f32 %v194, %v233
    %v307 = vmul.f32 %v195, %v238
    %v308 = vmul.f32 %v196, %v243
    %v309 = vmul.f32 %v197, %v248
    %v310 = vmul.f32 %v198, %v253
    %v311 = vmul.f32 %v199, %v258
    %v312 = vmul.f32 %v200, %v263
    %v313 = vmul.f32 %v201, %v268
    %v314 = vmul.f32 %v202, %v273
    %v315 = vmul.f32 %v203, %v278
    %v316 = vmul.f32 %v204, %v283
    %v317 = vmul.f32 %v205, %v288
    %v318 = vmul.f32 %v206, %v293
    %v319 = vmul.f32 %v207, %v298
    %v320 = vmul.f32 %v208, %v303
    %v321 = vld [vmem:[%s3] sm:$0x1]
    %v323 = vperm.slane %v321, 0
    %v325 = vadd.f32 %v305, %v323
    %v326 = vadd.f32 %v306, %v323
    %v327 = vadd.f32 %v307, %v323
    %v328 = vadd.f32 %v308, %v323
    %v329 = vadd.f32 %v309, %v323
    %v330 = vadd.f32 %v310, %v323
    %v331 = vadd.f32 %v311, %v323
    %v332 = vadd.f32 %v312, %v323
    %v333 = vadd.f32 %v313, %v323
    %v334 = vadd.f32 %v314, %v323
    %v335 = vadd.f32 %v315, %v323
    %v336 = vadd.f32 %v316, %v323
    %v337 = vadd.f32 %v317, %v323
    %v338 = vadd.f32 %v318, %v323
    %v339 = vadd.f32 %v319, %v323
    %v340 = vadd.f32 %v320, %v323
    %v341 = vld [vmem:[%s4] sm:$0xff]
    %v342 = vld [vmem:[%s4 + $0x8] sm:$0xff]
    %v343 = vld [vmem:[%s4 + $0x10] sm:$0xff]
    %v344 = vld [vmem:[%s4 + $0x18] sm:$0xff]
    %v345 = vld [vmem:[%s4 + $0x20] sm:$0xff]
    %v346 = vld [vmem:[%s4 + $0x28] sm:$0xff]
    %v347 = vld [vmem:[%s4 + $0x30] sm:$0xff]
    %v348 = vld [vmem:[%s4 + $0x38] sm:$0xff]
    %v349 = vld [vmem:[%s4 + $0x40] sm:$0xff]
    %v350 = vld [vmem:[%s4 + $0x48] sm:$0xff]
    %v351 = vld [vmem:[%s4 + $0x50] sm:$0xff]
    %v352 = vld [vmem:[%s4 + $0x58] sm:$0xff]
    %v353 = vld [vmem:[%s4 + $0x60] sm:$0xff]
    %v354 = vld [vmem:[%s4 + $0x68] sm:$0xff]
    %v355 = vld [vmem:[%s4 + $0x70] sm:$0xff]
    %v356 = vld [vmem:[%s4 + $0x78] sm:$0xff]
    %358 = vset.pattern.permute.xlu0 0
    %359 = vperm.xlu0 %358, %v341
    %v360 = vpop.permute.xlu0 %359
    %363 = vset.pattern.permute.xlu0 0
    %364 = vperm.xlu0 %363, %v342
    %v365 = vpop.permute.xlu0 %364
    %368 = vset.pattern.permute.xlu0 0
    %369 = vperm.xlu0 %368, %v343
    %v370 = vpop.permute.xlu0 %369
    %373 = vset.pattern.permute.xlu0 0
    %374 = vperm.xlu0 %373, %v344
    %v375 = vpop.permute.xlu0 %374
    %378 = vset.pattern.permute.xlu0 0
    %379 = vperm.xlu0 %378, %v345
    %v380 = vpop.permute.xlu0 %379
    %383 = vset.pattern.permute.xlu0 0
    %384 = vperm.xlu0 %383, %v346
    %v385 = vpop.permute.xlu0 %384
    %388 = vset.pattern.permute.xlu0 0
    %389 = vperm.xlu0 %388, %v347
    %v390 = vpop.permute.xlu0 %389
    %393 = vset.pattern.permute.xlu0 0
    %394 = vperm.xlu0 %393, %v348
    %v395 = vpop.permute.xlu0 %394
    %398 = vset.pattern.permute.xlu0 0
    %399 = vperm.xlu0 %398, %v349
    %v400 = vpop.permute.xlu0 %399
    %403 = vset.pattern.permute.xlu0 0
    %404 = vperm.xlu0 %403, %v350
    %v405 = vpop.permute.xlu0 %404
    %408 = vset.pattern.permute.xlu0 0
    %409 = vperm.xlu0 %408, %v351
    %v410 = vpop.permute.xlu0 %409
    %413 = vset.pattern.permute.xlu0 0
    %414 = vperm.xlu0 %413, %v352
    %v415 = vpop.permute.xlu0 %414
    %418 = vset.pattern.permute.xlu0 0
    %419 = vperm.xlu0 %418, %v353
    %v420 = vpop.permute.xlu0 %419
    %423 = vset.pattern.permute.xlu0 0
    %424 = vperm.xlu0 %423, %v354
    %v425 = vpop.permute.xlu0 %424
    %428 = vset.pattern.permute.xlu0 0
    %429 = vperm.xlu0 %428, %v355
    %v430 = vpop.permute.xlu0 %429
    %433 = vset.pattern.permute.xlu0 0
    %434 = vperm.xlu0 %433, %v356
    %v435 = vpop.permute.xlu0 %434
    %v437 = vmul.f32 %v325, %v360
    %v438 = vmul.f32 %v326, %v365
    %v439 = vmul.f32 %v327, %v370
    %v440 = vmul.f32 %v328, %v375
    %v441 = vmul.f32 %v329, %v380
    %v442 = vmul.f32 %v330, %v385
    %v443 = vmul.f32 %v331, %v390
    %v444 = vmul.f32 %v332, %v395
    %v445 = vmul.f32 %v333, %v400
    %v446 = vmul.f32 %v334, %v405
    %v447 = vmul.f32 %v335, %v410
    %v448 = vmul.f32 %v336, %v415
    %v449 = vmul.f32 %v337, %v420
    %v450 = vmul.f32 %v338, %v425
    %v451 = vmul.f32 %v339, %v430
    %v452 = vmul.f32 %v340, %v435
    %v453 = vld [vmem:[%s5] sm:$0xff]
    %v454 = vld [vmem:[%s5 + $0x8] sm:$0xff]
    %v455 = vld [vmem:[%s5 + $0x10] sm:$0xff]
    %v456 = vld [vmem:[%s5 + $0x18] sm:$0xff]
    %v457 = vld [vmem:[%s5 + $0x20] sm:$0xff]
    %v458 = vld [vmem:[%s5 + $0x28] sm:$0xff]
    %v459 = vld [vmem:[%s5 + $0x30] sm:$0xff]
    %v460 = vld [vmem:[%s5 + $0x38] sm:$0xff]
    %v461 = vld [vmem:[%s5 + $0x40] sm:$0xff]
    %v462 = vld [vmem:[%s5 + $0x48] sm:$0xff]
    %v463 = vld [vmem:[%s5 + $0x50] sm:$0xff]
    %v464 = vld [vmem:[%s5 + $0x58] sm:$0xff]
    %v465 = vld [vmem:[%s5 + $0x60] sm:$0xff]
    %v466 = vld [vmem:[%s5 + $0x68] sm:$0xff]
    %v467 = vld [vmem:[%s5 + $0x70] sm:$0xff]
    %v468 = vld [vmem:[%s5 + $0x78] sm:$0xff]
    %469 = vmatpush.msra.mxu0 %v468
    %470 = vmatpush.msra.mxu0 %v467
    %471 = vmatpush.msra.mxu0 %v466
    %472 = vmatpush.msra.mxu0 %v465
    %473 = vmatpush.msra.mxu0 %v464
    %474 = vmatpush.msra.mxu0 %v463
    %475 = vmatpush.msra.mxu0 %v462
    %476 = vmatpush.msra.mxu0 %v461
    %477 = vmatpush.msra.mxu0 %v460
    %478 = vmatpush.msra.mxu0 %v459
    %479 = vmatpush.msra.mxu0 %v458
    %480 = vmatpush.msra.mxu0 %v457
    %481 = vmatpush.msra.mxu0 %v456
    %482 = vmatpush.msra.mxu0 %v455
    %483 = vmatpush.msra.mxu0 %v454
    %484 = vmatpush.msra.mxu0 %v453
    %485 = vmatmul.f32.gmra.mxu0 %v437
    %v486 = vpop.f32.mrf.mxu0
    %v487 = vadd.f32 0.0, %v486
    %488 = vmatmul.f32.gmra.mxu0 %v438
    %v489 = vpop.f32.mrf.mxu0
    %v490 = vadd.f32 0.0, %v489
    %491 = vmatmul.f32.gmra.mxu0 %v439
    %v492 = vpop.f32.mrf.mxu0
    %v493 = vadd.f32 0.0, %v492
    %494 = vmatmul.f32.gmra.mxu0 %v440
    %v495 = vpop.f32.mrf.mxu0
    %v496 = vadd.f32 0.0, %v495
    %497 = vmatmul.f32.gmra.mxu0 %v441
    %v498 = vpop.f32.mrf.mxu0
    %v499 = vadd.f32 0.0, %v498
    %500 = vmatmul.f32.gmra.mxu0 %v442
    %v501 = vpop.f32.mrf.mxu0
    %v502 = vadd.f32 0.0, %v501
    %503 = vmatmul.f32.gmra.mxu0 %v443
    %v504 = vpop.f32.mrf.mxu0
    %v505 = vadd.f32 0.0, %v504
    %506 = vmatmul.f32.gmra.mxu0 %v444
    %v507 = vpop.f32.mrf.mxu0
    %v508 = vadd.f32 0.0, %v507
    %509 = vmatmul.f32.gmra.mxu0 %v445
    %v510 = vpop.f32.mrf.mxu0
    %v511 = vadd.f32 0.0, %v510
    %512 = vmatmul.f32.gmra.mxu0 %v446
    %v513 = vpop.f32.mrf.mxu0
    %v514 = vadd.f32 0.0, %v513
    %515 = vmatmul.f32.gmra.mxu0 %v447
    %v516 = vpop.f32.mrf.mxu0
    %v517 = vadd.f32 0.0, %v516
    %518 = vmatmul.f32.gmra.mxu0 %v448
    %v519 = vpop.f32.mrf.mxu0
    %v520 = vadd.f32 0.0, %v519
    %521 = vmatmul.f32.gmra.mxu0 %v449
    %v522 = vpop.f32.mrf.mxu0
    %v523 = vadd.f32 0.0, %v522
    %524 = vmatmul.f32.gmra.mxu0 %v450
    %v525 = vpop.f32.mrf.mxu0
    %v526 = vadd.f32 0.0, %v525
    %527 = vmatmul.f32.gmra.mxu0 %v451
    %v528 = vpop.f32.mrf.mxu0
    %v529 = vadd.f32 0.0, %v528
    %530 = vmatmul.f32.gmra.mxu0 %v452
    %v531 = vpop.f32.mrf.mxu0
    %v532 = vadd.f32 0.0, %v531
    %533 = vdwg.mxu0
    %534 = vst [vmem:[%s6] sm:$0xff] %v487
    %535 = vst [vmem:[%s6 + $0x8] sm:$0xff] %v490
    %536 = vst [vmem:[%s6 + $0x10] sm:$0xff] %v493
    %537 = vst [vmem:[%s6 + $0x18] sm:$0xff] %v496
    %538 = vst [vmem:[%s6 + $0x20] sm:$0xff] %v499
    %539 = vst [vmem:[%s6 + $0x28] sm:$0xff] %v502
    %540 = vst [vmem:[%s6 + $0x30] sm:$0xff] %v505
    %541 = vst [vmem:[%s6 + $0x38] sm:$0xff] %v508
    %542 = vst [vmem:[%s6 + $0x40] sm:$0xff] %v511
    %543 = vst [vmem:[%s6 + $0x48] sm:$0xff] %v514
    %544 = vst [vmem:[%s6 + $0x50] sm:$0xff] %v517
    %545 = vst [vmem:[%s6 + $0x58] sm:$0xff] %v520
    %546 = vst [vmem:[%s6 + $0x60] sm:$0xff] %v523
    %547 = vst [vmem:[%s6 + $0x68] sm:$0xff] %v526
    %548 = vst [vmem:[%s6 + $0x70] sm:$0xff] %v529
    %549 = vst [vmem:[%s6 + $0x78] sm:$0xff] %v532
  $region33: #{gcnae_forward.7} parent=0 // pred_fallthru
    _
  // Predicated region
  $region34: #{gcnae_forward.7} parent=0 // pred_check
    _
  $region35: #{gcnae_forward.7} parent=0 // pred_check_branch
    %551 = sbr.rel (0) target = $region37
  $region36: #{gcnae_forward.7} parent=0 // pred_region
    _
  $region37: #{gcnae_forward.7} parent=0 // pred_fallthru
    _
  // Predicated region
  $region38: #{gcnae_forward.7} parent=0 // pred_check
    _
  $region39: #{gcnae_forward.7} parent=0 // pred_check_branch
    %553 = sbr.rel (0) target = $region41
  $region40: #{gcnae_forward.7} parent=0 // pred_region
    _
  $region41: #{gcnae_forward.7} parent=0 // pred_fallthru
    _

// kernel: gcnae_forward.9
$region0: #{gcnae_forward.9}
  #allocation0 [shape = 'u32[]', space=smem, size = 0x4, offset = 0x4, fixed_abs, tag = 'smem constant byte address 0x4 - core index']
  #allocation1 [shape = 'u32[72,128]{1,0:T(1,128)}', space=vmem, size = 0x9000, scoped, tag = 'internal scratch']
  %s0 = inlined_call_operand.vmem [shape: f32[128,128], index: 0, kind: input, shape index: {}, may-alias: {0,1}]
  %s1 = inlined_call_operand.vmem [shape: f32[128,128], index: 1, kind: input, shape index: {}, may-alias: {0,1}]
  %s2 = inlined_call_operand.vmem [shape: f32[128,128], index: 2, kind: output, shape index: {}]
  %s3 = sld [smem:[#allocation0]]
  $region18: #{gcnae_forward.9} parent=0
    _
  %s5 = ssub.s32 1, %s3
  %s6 = scalar_select 0, %s5, %s3
  // Predicated region
  $region2: #{gcnae_forward.9} parent=0 // pred_check
    _
  $region3: #{gcnae_forward.9} parent=0 // pred_check_branch
    %8 = sbr.rel (0) target = $region5
  $region4: #{gcnae_forward.9} parent=0 // pred_region
    _
  $region5: #{gcnae_forward.9} parent=0 // pred_fallthru
    _
  // Predicated region
  $region6: #{gcnae_forward.9} parent=0 // pred_check
    _
  $region7: #{gcnae_forward.9} parent=0 // pred_check_branch
    %10 = sbr.rel (0) target = $region9
  $region8: #{gcnae_forward.9} parent=0 // pred_region
    _
  $region9: #{gcnae_forward.9} parent=0 // pred_fallthru
    _
  %s11 = smul.u32 0, 128
  %s12 = scalar_lea.vmem %s1, %s11
  %v13 = vld [vmem:[%s12] sm:$0xff]
  %v14 = vld [vmem:[%s12 + $0x8] sm:$0xff]
  %v15 = vld [vmem:[%s12 + $0x10] sm:$0xff]
  %v16 = vld [vmem:[%s12 + $0x18] sm:$0xff]
  %v17 = vld [vmem:[%s12 + $0x20] sm:$0xff]
  %v18 = vld [vmem:[%s12 + $0x28] sm:$0xff]
  %v19 = vld [vmem:[%s12 + $0x30] sm:$0xff]
  %v20 = vld [vmem:[%s12 + $0x38] sm:$0xff]
  %v21 = vld [vmem:[%s12 + $0x40] sm:$0xff]
  %v22 = vld [vmem:[%s12 + $0x48] sm:$0xff]
  %v23 = vld [vmem:[%s12 + $0x50] sm:$0xff]
  %v24 = vld [vmem:[%s12 + $0x58] sm:$0xff]
  %v25 = vld [vmem:[%s12 + $0x60] sm:$0xff]
  %v26 = vld [vmem:[%s12 + $0x68] sm:$0xff]
  %v27 = vld [vmem:[%s12 + $0x70] sm:$0xff]
  %v28 = vld [vmem:[%s12 + $0x78] sm:$0xff]
  %v29 = vld [vmem:[%s0] sm:$0xff]
  %v30 = vld [vmem:[%s0 + $0x8] sm:$0xff]
  %v31 = vld [vmem:[%s0 + $0x10] sm:$0xff]
  %v32 = vld [vmem:[%s0 + $0x18] sm:$0xff]
  %v33 = vld [vmem:[%s0 + $0x20] sm:$0xff]
  %v34 = vld [vmem:[%s0 + $0x28] sm:$0xff]
  %v35 = vld [vmem:[%s0 + $0x30] sm:$0xff]
  %v36 = vld [vmem:[%s0 + $0x38] sm:$0xff]
  %v37 = vld [vmem:[%s0 + $0x40] sm:$0xff]
  %v38 = vld [vmem:[%s0 + $0x48] sm:$0xff]
  %v39 = vld [vmem:[%s0 + $0x50] sm:$0xff]
  %v40 = vld [vmem:[%s0 + $0x58] sm:$0xff]
  %v41 = vld [vmem:[%s0 + $0x60] sm:$0xff]
  %v42 = vld [vmem:[%s0 + $0x68] sm:$0xff]
  %v43 = vld [vmem:[%s0 + $0x70] sm:$0xff]
  %v44 = vld [vmem:[%s0 + $0x78] sm:$0xff]
  %45 = vmatpush.xpose.msra.mxu0 %v28
  %46 = vmatpush.xpose.msra.mxu0 %v27
  %47 = vmatpush.xpose.msra.mxu0 %v26
  %48 = vmatpush.xpose.msra.mxu0 %v25
  %49 = vmatpush.xpose.msra.mxu0 %v24
  %50 = vmatpush.xpose.msra.mxu0 %v23
  %51 = vmatpush.xpose.msra.mxu0 %v22
  %52 = vmatpush.xpose.msra.mxu0 %v21
  %53 = vmatpush.xpose.msra.mxu0 %v20
  %54 = vmatpush.xpose.msra.mxu0 %v19
  %55 = vmatpush.xpose.msra.mxu0 %v18
  %56 = vmatpush.xpose.msra.mxu0 %v17
  %57 = vmatpush.xpose.msra.mxu0 %v16
  %58 = vmatpush.xpose.msra.mxu0 %v15
  %59 = vmatpush.xpose.msra.mxu0 %v14
  %60 = vmatpush.xpose.msra.mxu0 %v13
  %61 = vmatmul.f32.gmra.mxu0 %v29
  %v62 = vpop.f32.mrf.mxu0
  %v63 = vadd.f32 0.0, %v62
  %64 = vmatmul.f32.gmra.mxu0 %v30
  %v65 = vpop.f32.mrf.mxu0
  %v66 = vadd.f32 0.0, %v65
  %67 = vmatmul.f32.gmra.mxu0 %v31
  %v68 = vpop.f32.mrf.mxu0
  %v69 = vadd.f32 0.0, %v68
  %70 = vmatmul.f32.gmra.mxu0 %v32
  %v71 = vpop.f32.mrf.mxu0
  %v72 = vadd.f32 0.0, %v71
  %73 = vmatmul.f32.gmra.mxu0 %v33
  %v74 = vpop.f32.mrf.mxu0
  %v75 = vadd.f32 0.0, %v74
  %76 = vmatmul.f32.gmra.mxu0 %v34
  %v77 = vpop.f32.mrf.mxu0
  %v78 = vadd.f32 0.0, %v77
  %79 = vmatmul.f32.gmra.mxu0 %v35
  %v80 = vpop.f32.mrf.mxu0
  %v81 = vadd.f32 0.0, %v80
  %82 = vmatmul.f32.gmra.mxu0 %v36
  %v83 = vpop.f32.mrf.mxu0
  %v84 = vadd.f32 0.0, %v83
  %85 = vmatmul.f32.gmra.mxu0 %v37
  %v86 = vpop.f32.mrf.mxu0
  %v87 = vadd.f32 0.0, %v86
  %88 = vmatmul.f32.gmra.mxu0 %v38
  %v89 = vpop.f32.mrf.mxu0
  %v90 = vadd.f32 0.0, %v89
  %91 = vmatmul.f32.gmra.mxu0 %v39
  %v92 = vpop.f32.mrf.mxu0
  %v93 = vadd.f32 0.0, %v92
  %94 = vmatmul.f32.gmra.mxu0 %v40
  %v95 = vpop.f32.mrf.mxu0
  %v96 = vadd.f32 0.0, %v95
  %97 = vmatmul.f32.gmra.mxu0 %v41
  %v98 = vpop.f32.mrf.mxu0
  %v99 = vadd.f32 0.0, %v98
  %100 = vmatmul.f32.gmra.mxu0 %v42
  %v101 = vpop.f32.mrf.mxu0
  %v102 = vadd.f32 0.0, %v101
  %103 = vmatmul.f32.gmra.mxu0 %v43
  %v104 = vpop.f32.mrf.mxu0
  %v105 = vadd.f32 0.0, %v104
  %106 = vmatmul.f32.gmra.mxu0 %v44
  %v107 = vpop.f32.mrf.mxu0
  %v108 = vadd.f32 0.0, %v107
  %109 = vdwg.mxu0
  %110 = vst [vmem:[%s2] sm:$0xff] %v63
  %111 = vst [vmem:[%s2 + $0x8] sm:$0xff] %v66
  %112 = vst [vmem:[%s2 + $0x10] sm:$0xff] %v69
  %113 = vst [vmem:[%s2 + $0x18] sm:$0xff] %v72
  %114 = vst [vmem:[%s2 + $0x20] sm:$0xff] %v75
  %115 = vst [vmem:[%s2 + $0x28] sm:$0xff] %v78
  %116 = vst [vmem:[%s2 + $0x30] sm:$0xff] %v81
  %117 = vst [vmem:[%s2 + $0x38] sm:$0xff] %v84
  %118 = vst [vmem:[%s2 + $0x40] sm:$0xff] %v87
  %119 = vst [vmem:[%s2 + $0x48] sm:$0xff] %v90
  %120 = vst [vmem:[%s2 + $0x50] sm:$0xff] %v93
  %121 = vst [vmem:[%s2 + $0x58] sm:$0xff] %v96
  %122 = vst [vmem:[%s2 + $0x60] sm:$0xff] %v99
  %123 = vst [vmem:[%s2 + $0x68] sm:$0xff] %v102
  %124 = vst [vmem:[%s2 + $0x70] sm:$0xff] %v105
  %125 = vst [vmem:[%s2 + $0x78] sm:$0xff] %v108
  // Predicated region
  $region10: #{gcnae_forward.9} parent=0 // pred_check
    _
  $region11: #{gcnae_forward.9} parent=0 // pred_check_branch
    %127 = sbr.rel (0) target = $region13
  $region12: #{gcnae_forward.9} parent=0 // pred_region
    _
  $region13: #{gcnae_forward.9} parent=0 // pred_fallthru
    _
  // Predicated region
  $region14: #{gcnae_forward.9} parent=0 // pred_check
    _
  $region15: #{gcnae_forward.9} parent=0 // pred_check_branch
    %129 = sbr.rel (0) target = $region17
  $region16: #{gcnae_forward.9} parent=0 // pred_region
    _
  $region17: #{gcnae_forward.9} parent=0 // pred_fallthru
    _

</llo_original>
